<compile_context>
chip_gen: v5e
topology: v5e:2x2
jax: 0.10.0
libtpu: 0.0.40
codegen_flags: <defaults>
</compile_context>

<pallas_src>
import functools
import math

import jax
import jax.numpy as jnp
from jax import lax
from jax.experimental import pallas as pl
from jax.experimental.pallas import tpu as pltpu


# ---------------------------------------------------------------------------
# Head layout helpers: (S, H*hd) <-> (H, S, hd).  Pure data movement (same
# volume as any transpose implementation).  The preferred implementations use
# pltpu.einshape / jnp.transpose; a slice+stack form is the guaranteed
# fallback.  A one-time numerics-checked probe picks the method.
# ---------------------------------------------------------------------------
def _split_einshape(t2, H, hd):
    S = t2.shape[0]
    return pltpu.einshape("shd->hsd", t2.reshape(S, H, hd))


def _merge_einshape(t3):
    H, S, hd = t3.shape
    return pltpu.einshape("hsd->shd", t3).reshape(S, H * hd)


def _split_xpose(t2, H, hd):
    S = t2.shape[0]
    return jnp.transpose(t2.reshape(S, H, hd), (1, 0, 2))


def _merge_xpose(t3):
    H, S, hd = t3.shape
    return jnp.transpose(t3, (1, 0, 2)).reshape(S, H * hd)


def _split_stack(t2, H, hd):
    # Unrolled lane slices + leading-axis stack: layout movement only (no
    # per-head compute), guaranteed to lower.
    return jnp.stack([t2[:, h * hd:(h + 1) * hd] for h in range(H)], axis=0)


def _merge_stack(t3):
    return jnp.concatenate([t3[h] for h in range(t3.shape[0])], axis=-1)


@functools.lru_cache(maxsize=None)
def _pick_head_layout_impl(S, H, hd):
    """One-time capability probe (outside the hot path): pick the cheapest
    (S,H*hd)<->(H,S,hd) relayout that compiles AND matches reference numerics
    in both f32 and bf16."""
    HD = H * hd
    xf = jnp.arange(S * HD, dtype=jnp.float32).reshape(S, HD)
    xb = xf.astype(jnp.bfloat16)
    want_f = jnp.transpose(xf.reshape(S, H, hd), (1, 0, 2))
    want_b = jnp.transpose(xb.reshape(S, H, hd), (1, 0, 2))

    candidates = []
    if hasattr(pltpu, "einshape"):
        candidates.append((_split_einshape, _merge_einshape))
    candidates.append((_split_xpose, _merge_xpose))

    for split, merge in candidates:
        def probe(xf_ref, xb_ref, of_ref, ob_ref, or_ref, _s=split, _m=merge):
            of_ref[...] = _s(xf_ref[...], H, hd)
            ob_ref[...] = _s(xb_ref[...], H, hd)
            or_ref[...] = _m(_s(xb_ref[...], H, hd))

        try:
            of, ob, orr = pl.pallas_call(
                probe,
                out_shape=(jax.ShapeDtypeStruct((H, S, hd), jnp.float32),
                           jax.ShapeDtypeStruct((H, S, hd), jnp.bfloat16),
                           jax.ShapeDtypeStruct((S, HD), jnp.bfloat16)),
            )(xf, xb)
            if (bool(jnp.array_equal(of, want_f)) and
                    bool(jnp.array_equal(ob, want_b)) and
                    bool(jnp.array_equal(orr, xb))):
                return split, merge
        except Exception:
            pass
    return _split_stack, _merge_stack


@functools.lru_cache(maxsize=None)
def _single_buffer_supported():
    """One-time probe: does this JAX support pipeline_mode=pl.Buffered(1) for
    grid-invariant operands?  (Replaces the old broad try/except around the
    full kernel.)"""
    if not hasattr(pl, "Buffered"):
        return False

    def probe(x_ref, w_ref, o_ref):
        o_ref[...] = x_ref[...] + w_ref[...]

    try:
        out = pl.pallas_call(
            probe,
            grid=(2,),
            in_specs=[pl.BlockSpec((8, 128), lambda i: (i, 0)),
                      pl.BlockSpec((8, 128), lambda i: (0, 0),
                                   pipeline_mode=pl.Buffered(1))],
            out_specs=pl.BlockSpec((8, 128), lambda i: (i, 0)),
            out_shape=jax.ShapeDtypeStruct((16, 128), jnp.float32),
        )(jnp.zeros((16, 128), jnp.float32), jnp.ones((8, 128), jnp.float32))
        return bool(jnp.array_equal(out, jnp.ones((16, 128), jnp.float32)))
    except Exception:
        return False


@functools.lru_cache(maxsize=None)
def _vmem_limit_bytes():
    cap = 128 * 1024 * 1024
    try:
        cap = int(getattr(pltpu.get_tpu_info(), "vmem_capacity_bytes", cap))
    except Exception:
        pass
    # ~100 MiB on 128 MiB parts (v5e/v6e); ~54 MiB headroom under v7x's 64 MiB.
    return int(min(100 * 1024 * 1024, int(cap * 0.85)))


# ---------------------------------------------------------------------------
# Kernel: one full transformer block per batch element.
# ---------------------------------------------------------------------------
def transformer_block_kernel(x_ref, cos_ref, sin_ref, wqkv_ref, wo_ref,
                             w13_ref, w2_ref, anw_ref, fnw_ref, o_ref,
                             *, n_heads, head_dim, hidden, eps,
                             split_heads, merge_heads):
    f32, bf16 = jnp.float32, jnp.bfloat16

    x = x_ref[0]                                    # (S, D) f32
    S, D = x.shape
    H, hd = n_heads, head_dim
    HD = H * hd
    hd2 = hd // 2

    def rmsnorm(t, w):                              # w: (1, D) f32
        ms = jnp.mean(t * t, axis=-1, keepdims=True)
        return t * lax.rsqrt(ms + eps) * w

    # ------------------------------ attention ------------------------------
    hn = rmsnorm(x, anw_ref[...]).astype(bf16)      # (S, D) bf16
    # Fused Q/K/V projection: one lane-dense MXU matmul, f32 accumulation.
    qkv = jnp.dot(hn, wqkv_ref[...], preferred_element_type=f32)  # (S, 3*HD)

    # Head-major layout (H, S, hd) — pure data movement (probed relayout).
    q = split_heads(qkv[:, :HD], H, hd)                         # f32, [re|im]
    k = split_heads(qkv[:, HD:2 * HD], H, hd)                   # f32, [re|im]
    v = split_heads(qkv[:, 2 * HD:].astype(bf16), H, hd)        # bf16

    # Rotate-half RoPE at full head width (1/sqrt(hd) pre-folded into wq).
    cosf = cos_ref[...][None]                       # (1, S, hd) = [cos | cos]
    sinf = sin_ref[...][None]                       # (1, S, hd) = [-sin| sin]

    def rope(t):
        # swap halves: [re | im] -> [im | re].
        # TODO(synk): at production hd=128 use pltpu.roll(t, hd//2, axis=-1)
        # (free XLU slot) instead of slice+concat.
        swapped = jnp.concatenate([t[..., hd2:], t[..., :hd2]], axis=-1)
        return (t * cosf + swapped * sinf).astype(bf16)

    qr, kr = rope(q), rope(k)

    # Scores: one batched MXU call over heads.
    s = jnp.einsum('hsk,htk->hst', qr, kr, preferred_element_type=f32)

    # Causal mask in-register (no (S,S) mask buffer / add).
    # TODO(synk): becomes the per-kv-tile skip check in the flash rewrite.
    row = lax.broadcasted_iota(jnp.int32, (S, S), 0)
    col = lax.broadcasted_iota(jnp.int32, (S, S), 1)
    s = jnp.where((row >= col)[None], s, -jnp.inf)

    s = s - jnp.max(s, axis=-1, keepdims=True)
    p = jnp.exp(s)
    # Exact normalization (review correctness note): cheap vs. the matmuls.
    p = p / jnp.sum(p, axis=-1, keepdims=True)

    o_h = jnp.einsum('hst,htk->hsk', p.astype(bf16), v,
                     preferred_element_type=f32)    # (H, S, hd)

    # Output projection: head reduction happens inside the MXU f32 accumulator.
    o2 = merge_heads(o_h.astype(bf16))              # (S, H*hd) bf16
    attn = jnp.dot(o2, wo_ref[...], preferred_element_type=f32)   # (S, D)

    h1 = x + attn

    # ----------------------------- SwiGLU FFN ------------------------------
    g = rmsnorm(h1, fnw_ref[...]).astype(bf16)
    a13 = jnp.dot(g, w13_ref[...], preferred_element_type=f32)    # (S, 2*hid)
    a1, a3 = a13[:, :hidden], a13[:, hidden:]
    silu = a1 * pl.reciprocal(1.0 + jnp.exp(-a1), approx=True)    # EUP slot
    ff = jnp.dot((silu * a3).astype(bf16), w2_ref[...],
                 preferred_element_type=f32)                      # (S, D)

    o_ref[0] = (h1 + ff).astype(o_ref.dtype)
    # TODO(synk): optional bf16 activation I/O (x/out) with in-kernel f32
    # residual math would halve HBM traffic in the decode regime.


def _build_call(B, S, D, n_heads, head_dim, hidden, eps,
                split_heads, merge_heads, use_single_buffer):
    H, hd = n_heads, head_dim
    HD = H * hd

    def wspec(shape):
        idx = lambda b, _n=len(shape): (0,) * _n    # grid-invariant block
        if use_single_buffer:
            return pl.BlockSpec(shape, idx, pipeline_mode=pl.Buffered(1))
        return pl.BlockSpec(shape, idx)

    kern = functools.partial(transformer_block_kernel,
                             n_heads=H, head_dim=hd, hidden=hidden, eps=eps,
                             split_heads=split_heads, merge_heads=merge_heads)

    # TODO(synk): for production shapes add a "parallel" seq-tile grid axis
    # (both v7x TensorCores busy at B==1) and an "arbitrary" K/N weight-tiling
    # axis with a VMEM f32 accumulator.
    return pl.pallas_call(
        kern,
        out_shape=jax.ShapeDtypeStruct((B, S, D), jnp.float32),
        grid=(B,),
        in_specs=[
            pl.BlockSpec((1, S, D), lambda b: (b, 0, 0)),   # x
            wspec((S, hd)), wspec((S, hd)),                 # cos_full, sin_signed
            wspec((D, 3 * HD)),                             # fused wqkv
            wspec((HD, D)),                                 # wo
            wspec((D, 2 * hidden)),                         # fused w1|w3
            wspec((hidden, D)),                             # w2
            wspec((1, D)), wspec((1, D)),                   # norm weights
        ],
        out_specs=pl.BlockSpec((1, S, D), lambda b: (b, 0, 0)),
        compiler_params=pltpu.CompilerParams(
            dimension_semantics=("parallel",),
            vmem_limit_bytes=_vmem_limit_bytes()),
    )


def transformer_block(x, cos_half, sin_half, kp, *, n_heads, head_dim, eps):
    B, S, D = x.shape
    hidden = kp["w2"].shape[0]

    # Full-width RoPE tables: cos tiled, sin with the rotate-half sign pattern.
    cos_full = jnp.concatenate([cos_half, cos_half], axis=-1)     # (S, hd)
    sin_signed = jnp.concatenate([-sin_half, sin_half], axis=-1)  # (S, hd)

    split_heads, merge_heads = _pick_head_layout_impl(S, n_heads, head_dim)
    use_single_buffer = _single_buffer_supported()

    call = _build_call(B, S, D, n_heads, head_dim, hidden, eps,
                       split_heads, merge_heads, use_single_buffer)
    return call(x, cos_full, sin_signed,
                kp["wqkv"], kp["wo"], kp["w13"], kp["w2"],
                kp["attn_norm_w"], kp["ffn_norm_w"])


def prepare_kernel_params(params, *, n_heads, head_dim):
    """Host-side weight prep: per-head de-interleaved (rotate-half) q/k
    columns, 1/sqrt(head_dim) folded into wq, fused [wq|wk|wv] and [w1|w3]
    matrices, bf16 storage, wo kept in its natural (H*hd, D) layout."""
    D = params["wq"].shape[0]
    H, hd = n_heads, head_dim
    scale = 1.0 / math.sqrt(hd)
    bf16 = jnp.bfloat16

    def deinterleave(w):                            # (D, H*hd) per-head [even|odd]
        w3 = w.reshape(D, H, hd)
        w3 = jnp.concatenate([w3[:, :, 0::2], w3[:, :, 1::2]], axis=-1)
        return w3.reshape(D, H * hd)

    wqkv = jnp.concatenate([deinterleave(params["wq"]) * scale,
                            deinterleave(params["wk"]),
                            params["wv"]], axis=1).astype(bf16)
    w13 = jnp.concatenate([params["w1"], params["w3"]], axis=1).astype(bf16)
    return {
        "wqkv": wqkv,
        "wo": params["wo"].astype(bf16),
        "w13": w13,
        "w2": params["w2"].astype(bf16),
        "attn_norm_w": params["attn_norm_w"].astype(jnp.float32),
        "ffn_norm_w": params["ffn_norm_w"].astype(jnp.float32),
    }


# --------------- pure-JAX reference (mirrors the PyTorch module) ---------------
def reference_block(x, cos_half, sin_half, params, *, n_heads, head_dim, eps):
    B, S, D = x.shape

    def rmsnorm(t, w):
        return t * lax.rsqrt(jnp.mean(t * t, -1, keepdims=True) + eps) * w

    def rope(t):
        tr = t.reshape(B, S, n_heads, head_dim // 2, 2)
        te, to = tr[..., 0], tr[..., 1]
        c = cos_half[None, :, None, :]
        s = sin_half[None, :, None, :]
        return jnp.stack([te * c - to * s, te * s + to * c], axis=-1).reshape(
            B, S, n_heads, head_dim)

    h = rmsnorm(x, params["attn_norm_w"])
    q = (h @ params["wq"]).reshape(B, S, n_heads, head_dim)
    k = (h @ params["wk"]).reshape(B, S, n_heads, head_dim)
    v = (h @ params["wv"]).reshape(B, S, n_heads, head_dim)
    q, k = rope(q), rope(k)
    q = q.transpose(0, 2, 1, 3)
    k = k.transpose(0, 2, 1, 3)
    v = v.transpose(0, 2, 1, 3)
    scores = jnp.einsum("bhqd,bhkd->bhqk", q, k) / math.sqrt(head_dim)
    mask = jnp.where(jnp.arange(S)[:, None] >= jnp.arange(S)[None, :], 0.0, -jnp.inf)
    scores = scores + mask
    p = jax.nn.softmax(scores, axis=-1)
    o = jnp.einsum("bhqk,bhkd->bhqd", p, v)
    o = o.transpose(0, 2, 1, 3).reshape(B, S, n_heads * head_dim)
    h1 = x + o @ params["wo"]
    g = rmsnorm(h1, params["ffn_norm_w"])
    ff = (jax.nn.silu(g @ params["w1"]) * (g @ params["w3"])) @ params["w2"]
    return h1 + ff


if __name__ == "__main__":
    # Small config: dim=64, n_heads=4 (n_kv_heads=None -> 4), seq=8, batch=2,
    # multiple_of=32, ffn_dim_multiplier=None, norm_eps=1e-5 -> hidden=192.
    B, S, D = 2, 8, 64
    n_heads = 4
    head_dim = D // n_heads          # 16
    HD = n_heads * head_dim
    eps = 1e-5
    multiple_of = 32
    hidden = int(2 * (4 * D) / 3)
    hidden = multiple_of * ((hidden + multiple_of - 1) // multiple_of)   # 192

    key = jax.random.PRNGKey(0)
    ks = jax.random.split(key, 10)

    def bf16_round(a):               # kernel stores weights in bf16; use the
        return a.astype(jnp.bfloat16).astype(jnp.float32)   # same values in ref

    init = lambda k, shape: bf16_round(
        (0.05 * jax.random.normal(k, shape)).astype(jnp.float32))
    params = {
        "wq": init(ks[0], (D, HD)),
        "wk": init(ks[1], (D, HD)),
        "wv": init(ks[2], (D, HD)),
        "wo": init(ks[3], (HD, D)),
        "w1": init(ks[4], (D, hidden)),
        "w2": init(ks[5], (hidden, D)),
        "w3": init(ks[6], (D, hidden)),
        "attn_norm_w": (1.0 + 0.1 * jax.random.normal(ks[7], (1, D))).astype(jnp.float32),
        "ffn_norm_w": (1.0 + 0.1 * jax.random.normal(ks[8], (1, D))).astype(jnp.float32),
    }
    x = jax.random.normal(ks[9], (B, S, D), dtype=jnp.float32)

    # Rotary tables (LLaMA precompute_freqs_cis), one entry per pair index.
    theta = 1.0 / (10000.0 ** (jnp.arange(0, head_dim, 2, dtype=jnp.float32) / head_dim))
    angles = jnp.outer(jnp.arange(S, dtype=jnp.float32), theta)   # (S, hd/2)
    cos_half, sin_half = jnp.cos(angles), jnp.sin(angles)

    kp = prepare_kernel_params(params, n_heads=n_heads, head_dim=head_dim)
    out = transformer_block(x, cos_half, sin_half, kp,
                            n_heads=n_heads, head_dim=head_dim, eps=eps)
    out = jax.block_until_ready(out)

    with jax.default_matmul_precision("highest"):
        ref = jax.block_until_ready(
            reference_block(x, cos_half, sin_half, params,
                            n_heads=n_heads, head_dim=head_dim, eps=eps))

    err = float(jnp.max(jnp.abs(out - ref)))
    # bf16 matmul inputs + approx SiLU reciprocal vs a pure-f32 reference.
    assert err < 2e-2, f"max abs err {err}"
    print("KERNEL_OK")
</pallas_src>

<mosaic_0001>
module attributes {stable_mosaic.version = 11 : i64} {
  func.func @probe(%arg0: memref<8x64xf32, #tpu.memory_space<vmem>>, %arg1: memref<8x64xbf16, #tpu.memory_space<vmem>>, %arg2: memref<4x8x16xf32, #tpu.memory_space<vmem>>, %arg3: memref<4x8x16xbf16, #tpu.memory_space<vmem>>, %arg4: memref<8x64xbf16, #tpu.memory_space<vmem>>) attributes {dimension_semantics = [], scalar_prefetch = 0 : i64, scratch_operands = 0 : i64, tpu.core_type = #tpu.core_type<tc>} {
    %c0 = arith.constant 0 : index
    %c0_0 = arith.constant 0 : index
    %0 = vector.load %arg0[%c0, %c0_0] : memref<8x64xf32, #tpu.memory_space<vmem>>, vector<8x64xf32>
    %1 = vector.shape_cast %0 : vector<8x64xf32> to vector<8x4x16xf32>
    %2 = tpu.transpose %1, [1, 0, 2] : vector<8x4x16xf32> -> vector<4x8x16xf32>
    %c0_1 = arith.constant 0 : index
    %c0_2 = arith.constant 0 : index
    %c0_3 = arith.constant 0 : index
    %3 = vector.load %arg2[%c0_1, %c0_2, %c0_3] : memref<4x8x16xf32, #tpu.memory_space<vmem>>, vector<4x8x16xf32>
    tpu.vector_store %arg2[%c0_1, %c0_2, %c0_3], %2 {strides = array<i32>} : memref<4x8x16xf32, #tpu.memory_space<vmem>>, vector<4x8x16xf32>,
    %c0_4 = arith.constant 0 : index
    %c0_5 = arith.constant 0 : index
    %4 = vector.load %arg1[%c0_4, %c0_5] : memref<8x64xbf16, #tpu.memory_space<vmem>>, vector<8x64xbf16>
    %5 = vector.shape_cast %4 : vector<8x64xbf16> to vector<8x4x16xbf16>
    %6 = tpu.transpose %5, [1, 0, 2] : vector<8x4x16xbf16> -> vector<4x8x16xbf16>
    %c0_6 = arith.constant 0 : index
    %c0_7 = arith.constant 0 : index
    %c0_8 = arith.constant 0 : index
    %7 = vector.load %arg3[%c0_6, %c0_7, %c0_8] : memref<4x8x16xbf16, #tpu.memory_space<vmem>>, vector<4x8x16xbf16>
    tpu.vector_store %arg3[%c0_6, %c0_7, %c0_8], %6 {strides = array<i32>} : memref<4x8x16xbf16, #tpu.memory_space<vmem>>, vector<4x8x16xbf16>,
    %c0_9 = arith.constant 0 : index
    %c0_10 = arith.constant 0 : index
    %8 = vector.load %arg1[%c0_9, %c0_10] : memref<8x64xbf16, #tpu.memory_space<vmem>>, vector<8x64xbf16>
    %9 = vector.shape_cast %8 : vector<8x64xbf16> to vector<8x4x16xbf16>
    %10 = tpu.transpose %9, [1, 0, 2] : vector<8x4x16xbf16> -> vector<4x8x16xbf16>
    %11 = tpu.transpose %10, [1, 0, 2] : vector<4x8x16xbf16> -> vector<8x4x16xbf16>
    %12 = vector.shape_cast %11 : vector<8x4x16xbf16> to vector<8x64xbf16>
    %c0_11 = arith.constant 0 : index
    %c0_12 = arith.constant 0 : index
    %13 = vector.load %arg4[%c0_11, %c0_12] : memref<8x64xbf16, #tpu.memory_space<vmem>>, vector<8x64xbf16>
    tpu.vector_store %arg4[%c0_11, %c0_12], %12 {strides = array<i32>} : memref<8x64xbf16, #tpu.memory_space<vmem>>, vector<8x64xbf16>,
    return
  }
}

module attributes {stable_mosaic.version = 11 : i64} {
  func.func @probe(%arg0: memref<8x64xf32, #tpu.memory_space<vmem>>, %arg1: memref<8x64xbf16, #tpu.memory_space<vmem>>, %arg2: memref<4x8x16xf32, #tpu.memory_space<vmem>>, %arg3: memref<4x8x16xbf16, #tpu.memory_space<vmem>>, %arg4: memref<8x64xbf16, #tpu.memory_space<vmem>>) attributes {dimension_semantics = [], scalar_prefetch = 0 : i64, scratch_operands = 0 : i64, tpu.core_type = #tpu.core_type<tc>} {
    %c0 = arith.constant 0 : index
    %c0_0 = arith.constant 0 : index
    %0 = vector.load %arg0[%c0, %c0_0] : memref<8x64xf32, #tpu.memory_space<vmem>>, vector<8x64xf32>
    %1 = vector.shape_cast %0 : vector<8x64xf32> to vector<8x4x16xf32>
    %2 = tpu.transpose %1, [1, 0, 2] : vector<8x4x16xf32> -> vector<4x8x16xf32>
    %c0_1 = arith.constant 0 : index
    %c0_2 = arith.constant 0 : index
    %c0_3 = arith.constant 0 : index
    %3 = vector.load %arg2[%c0_1, %c0_2, %c0_3] : memref<4x8x16xf32, #tpu.memory_space<vmem>>, vector<4x8x16xf32>
    tpu.vector_store %arg2[%c0_1, %c0_2, %c0_3], %2 {strides = array<i32>} : memref<4x8x16xf32, #tpu.memory_space<vmem>>, vector<4x8x16xf32>,
    %c0_4 = arith.constant 0 : index
    %c0_5 = arith.constant 0 : index
    %4 = vector.load %arg1[%c0_4, %c0_5] : memref<8x64xbf16, #tpu.memory_space<vmem>>, vector<8x64xbf16>
    %5 = vector.shape_cast %4 : vector<8x64xbf16> to vector<8x4x16xbf16>
    %6 = tpu.transpose %5, [1, 0, 2] : vector<8x4x16xbf16> -> vector<4x8x16xbf16>
    %c0_6 = arith.constant 0 : index
    %c0_7 = arith.constant 0 : index
    %c0_8 = arith.constant 0 : index
    %7 = vector.load %arg3[%c0_6, %c0_7, %c0_8] : memref<4x8x16xbf16, #tpu.memory_space<vmem>>, vector<4x8x16xbf16>
    tpu.vector_store %arg3[%c0_6, %c0_7, %c0_8], %6 {strides = array<i32>} : memref<4x8x16xbf16, #tpu.memory_space<vmem>>, vector<4x8x16xbf16>,
    %c0_9 = arith.constant 0 : index
    %c0_10 = arith.constant 0 : index
    %8 = vector.load %arg1[%c0_9, %c0_10] : memref<8x64xbf16, #tpu.memory_space<vmem>>, vector<8x64xbf16>
    %9 = vector.shape_cast %8 : vector<8x64xbf16> to vector<8x4x16xbf16>
    %10 = tpu.transpose %9, [1, 0, 2] : vector<8x4x16xbf16> -> vector<4x8x16xbf16>
    %11 = tpu.transpose %10, [1, 0, 2] : vector<4x8x16xbf16> -> vector<8x4x16xbf16>
    %12 = vector.shape_cast %11 : vector<8x4x16xbf16> to vector<8x64xbf16>
    %c0_11 = arith.constant 0 : index
    %c0_12 = arith.constant 0 : index
    %13 = vector.load %arg4[%c0_11, %c0_12] : memref<8x64xbf16, #tpu.memory_space<vmem>>, vector<8x64xbf16>
    tpu.vector_store %arg4[%c0_11, %c0_12], %12 {strides = array<i32>} : memref<8x64xbf16, #tpu.memory_space<vmem>>, vector<8x64xbf16>,
    return
  }
}

module attributes {stable_mosaic.version = 11 : i64} {
  func.func @probe(%arg0: i32, %arg1: memref<8x128xf32, #tpu.memory_space<vmem>>, %arg2: memref<8x128xf32, #tpu.memory_space<vmem>>, %arg3: memref<8x128xf32, #tpu.memory_space<vmem>>) attributes {dimension_semantics = [#tpu.dimension_semantics<arbitrary>], iteration_bounds = array<i64: 2>, scalar_prefetch = 0 : i64, scratch_operands = 0 : i64, tpu.core_type = #tpu.core_type<tc>, window_params = [{transform_indices = @transform_0, window_bounds = array<i64: 8, 128>}, {pipeline_mode = #tpu.pipeline_mode<synchronous>, transform_indices = @transform_1, window_bounds = array<i64: 8, 128>}, {transform_indices = @transform_2, window_bounds = array<i64: 8, 128>}]} {
    %c0 = arith.constant 0 : index
    %c0_0 = arith.constant 0 : index
    %0 = vector.load %arg1[%c0, %c0_0] : memref<8x128xf32, #tpu.memory_space<vmem>>, vector<8x128xf32>
    %c0_1 = arith.constant 0 : index
    %c0_2 = arith.constant 0 : index
    %1 = vector.load %arg2[%c0_1, %c0_2] : memref<8x128xf32, #tpu.memory_space<vmem>>, vector<8x128xf32>
    %2 = arith.addf %0, %1 : vector<8x128xf32>
    %c0_3 = arith.constant 0 : index
    %c0_4 = arith.constant 0 : index
    %3 = vector.load %arg3[%c0_3, %c0_4] : memref<8x128xf32, #tpu.memory_space<vmem>>, vector<8x128xf32>
    tpu.vector_store %arg3[%c0_3, %c0_4], %2 {strides = array<i32>} : memref<8x128xf32, #tpu.memory_space<vmem>>, vector<8x128xf32>,
    return
  }
  func.func @transform_0(%arg0: i32) -> (i32, i32) {
    %c0_i32 = arith.constant 0 : i32
    %c0_i32_0 = arith.constant 0 : i32
    return %arg0, %c0_i32 : i32, i32
  }
  func.func @transform_1(%arg0: i32) -> (i32, i32) {
    %c0_i32 = arith.constant 0 : i32
    %c0_i32_0 = arith.constant 0 : i32
    %c0_i32_1 = arith.constant 0 : i32
    return %c0_i32, %c0_i32_0 : i32, i32
  }
  func.func @transform_2(%arg0: i32) -> (i32, i32) {
    %c0_i32 = arith.constant 0 : i32
    %c0_i32_0 = arith.constant 0 : i32
    return %arg0, %c0_i32 : i32, i32
  }
}

module attributes {stable_mosaic.version = 11 : i64} {
  func.func @transformer_block_kernel(%arg0: i32, %arg1: memref<1x8x64xf32, #tpu.memory_space<vmem>>, %arg2: memref<8x16xf32, #tpu.memory_space<vmem>>, %arg3: memref<8x16xf32, #tpu.memory_space<vmem>>, %arg4: memref<64x192xbf16, #tpu.memory_space<vmem>>, %arg5: memref<64x64xbf16, #tpu.memory_space<vmem>>, %arg6: memref<64x384xbf16, #tpu.memory_space<vmem>>, %arg7: memref<192x64xbf16, #tpu.memory_space<vmem>>, %arg8: memref<1x64xf32, #tpu.memory_space<vmem>>, %arg9: memref<1x64xf32, #tpu.memory_space<vmem>>, %arg10: memref<1x8x64xf32, #tpu.memory_space<vmem>>) attributes {dimension_semantics = [#tpu.dimension_semantics<parallel>], iteration_bounds = array<i64: 2>, scalar_prefetch = 0 : i64, scratch_operands = 0 : i64, tpu.core_type = #tpu.core_type<tc>, window_params = [{transform_indices = @transform_0, window_bounds = array<i64: 1, 8, 64>}, {pipeline_mode = #tpu.pipeline_mode<synchronous>, transform_indices = @transform_1, window_bounds = array<i64: 8, 16>}, {pipeline_mode = #tpu.pipeline_mode<synchronous>, transform_indices = @transform_2, window_bounds = array<i64: 8, 16>}, {pipeline_mode = #tpu.pipeline_mode<synchronous>, transform_indices = @transform_3, window_bounds = array<i64: 64, 192>}, {pipeline_mode = #tpu.pipeline_mode<synchronous>, transform_indices = @transform_4, window_bounds = array<i64: 64, 64>}, {pipeline_mode = #tpu.pipeline_mode<synchronous>, transform_indices = @transform_5, window_bounds = array<i64: 64, 384>}, {pipeline_mode = #tpu.pipeline_mode<synchronous>, transform_indices = @transform_6, window_bounds = array<i64: 192, 64>}, {pipeline_mode = #tpu.pipeline_mode<synchronous>, transform_indices = @transform_7, window_bounds = array<i64: 1, 64>}, {pipeline_mode = #tpu.pipeline_mode<synchronous>, transform_indices = @transform_8, window_bounds = array<i64: 1, 64>}, {transform_indices = @transform_9, window_bounds = array<i64: 1, 8, 64>}]} {
    %c0 = arith.constant 0 : index
    %c0_0 = arith.constant 0 : index
    %c0_1 = arith.constant 0 : index
    %0 = vector.load %arg1[%c0, %c0_0, %c0_1] : memref<1x8x64xf32, #tpu.memory_space<vmem>>, vector<1x8x64xf32>
    %1 = vector.shape_cast %0 : vector<1x8x64xf32> to vector<8x64xf32>
    %c0_2 = arith.constant 0 : index
    %c0_3 = arith.constant 0 : index
    %2 = vector.load %arg8[%c0_2, %c0_3] : memref<1x64xf32, #tpu.memory_space<vmem>>, vector<1x64xf32>
    %3 = arith.mulf %1, %1 : vector<8x64xf32>
    %cst = arith.constant dense<0.000000e+00> : vector<8xf32>
    %4 = vector.multi_reduction <add>, %3, %cst [1] : vector<8x64xf32> to vector<8xf32>
    %5 = vector.shape_cast %4 : vector<8xf32> to vector<8x1xf32>
    %cst_4 = arith.constant 6.400000e+01 : f32
    %6 = vector.broadcast %cst_4 : f32 to vector<8x1xf32>
    %7 = arith.divf %5, %6 : vector<8x1xf32>
    %cst_5 = arith.constant 9.99999974E-6 : f32
    %8 = vector.broadcast %cst_5 : f32 to vector<8x1xf32>
    %9 = arith.addf %7, %8 : vector<8x1xf32>
    %10 = math.rsqrt %9 : vector<8x1xf32>
    %11 = vector.broadcast %10 : vector<8x1xf32> to vector<8x64xf32>
    %12 = arith.mulf %1, %11 : vector<8x64xf32>
    %13 = vector.broadcast %2 : vector<1x64xf32> to vector<8x64xf32>
    %14 = arith.mulf %12, %13 : vector<8x64xf32>
    %15 = arith.truncf %14 : vector<8x64xf32> to vector<8x64xbf16>
    %c0_6 = arith.constant 0 : index
    %c0_7 = arith.constant 0 : index
    %16 = vector.load %arg4[%c0_6, %c0_7] : memref<64x192xbf16, #tpu.memory_space<vmem>>, vector<64x192xbf16>
    %cst_8 = arith.constant dense<0.000000e+00> : vector<8x192xf32>
    %17 = tpu.matmul %15, %16, %cst_8 {dimension_numbers = #tpu.dot_dimension_numbers<[1], [0], [0], [1], [0, 0, 1, 1], [], []>} : vector<8x64xbf16>, vector<64x192xbf16>, vector<8x192xf32> -> vector<8x192xf32>
    %18 = vector.extract_strided_slice %17 {offsets = [0, 0], sizes = [8, 64], strides = [1, 1]} : vector<8x192xf32> to vector<8x64xf32>
    %19 = vector.extract_strided_slice %18 {offsets = [0, 0], sizes = [8, 16], strides = [1, 1]} : vector<8x64xf32> to vector<8x16xf32>
    %20 = vector.extract_strided_slice %18 {offsets = [0, 16], sizes = [8, 16], strides = [1, 1]} : vector<8x64xf32> to vector<8x16xf32>
    %21 = vector.extract_strided_slice %18 {offsets = [0, 32], sizes = [8, 16], strides = [1, 1]} : vector<8x64xf32> to vector<8x16xf32>
    %22 = vector.extract_strided_slice %18 {offsets = [0, 48], sizes = [8, 16], strides = [1, 1]} : vector<8x64xf32> to vector<8x16xf32>
    %23 = vector.shape_cast %19 : vector<8x16xf32> to vector<1x8x16xf32>
    %24 = vector.shape_cast %20 : vector<8x16xf32> to vector<1x8x16xf32>
    %25 = vector.shape_cast %21 : vector<8x16xf32> to vector<1x8x16xf32>
    %26 = vector.shape_cast %22 : vector<8x16xf32> to vector<1x8x16xf32>
    %27 = tpu.concatenate %23, %24, %25, %26 in 0 : vector<1x8x16xf32>, vector<1x8x16xf32>, vector<1x8x16xf32>, vector<1x8x16xf32> -> vector<4x8x16xf32>
    %28 = vector.extract_strided_slice %17 {offsets = [0, 64], sizes = [8, 64], strides = [1, 1]} : vector<8x192xf32> to vector<8x64xf32>
    %29 = vector.extract_strided_slice %28 {offsets = [0, 0], sizes = [8, 16], strides = [1, 1]} : vector<8x64xf32> to vector<8x16xf32>
    %30 = vector.extract_strided_slice %28 {offsets = [0, 16], sizes = [8, 16], strides = [1, 1]} : vector<8x64xf32> to vector<8x16xf32>
    %31 = vector.extract_strided_slice %28 {offsets = [0, 32], sizes = [8, 16], strides = [1, 1]} : vector<8x64xf32> to vector<8x16xf32>
    %32 = vector.extract_strided_slice %28 {offsets = [0, 48], sizes = [8, 16], strides = [1, 1]} : vector<8x64xf32> to vector<8x16xf32>
    %33 = vector.shape_cast %29 : vector<8x16xf32> to vector<1x8x16xf32>
    %34 = vector.shape_cast %30 : vector<8x16xf32> to vector<1x8x16xf32>
    %35 = vector.shape_cast %31 : vector<8x16xf32> to vector<1x8x16xf32>
    %36 = vector.shape_cast %32 : vector<8x16xf32> to vector<1x8x16xf32>
    %37 = tpu.concatenate %33, %34, %35, %36 in 0 : vector<1x8x16xf32>, vector<1x8x16xf32>, vector<1x8x16xf32>, vector<1x8x16xf32> -> vector<4x8x16xf32>
    %38 = vector.extract_strided_slice %17 {offsets = [0, 128], sizes = [8, 64], strides = [1, 1]} : vector<8x192xf32> to vector<8x64xf32>
    %39 = arith.truncf %38 : vector<8x64xf32> to vector<8x64xbf16>
    %40 = vector.extract_strided_slice %39 {offsets = [0, 0], sizes = [8, 16], strides = [1, 1]} : vector<8x64xbf16> to vector<8x16xbf16>
    %41 = vector.extract_strided_slice %39 {offsets = [0, 16], sizes = [8, 16], strides = [1, 1]} : vector<8x64xbf16> to vector<8x16xbf16>
    %42 = vector.extract_strided_slice %39 {offsets = [0, 32], sizes = [8, 16], strides = [1, 1]} : vector<8x64xbf16> to vector<8x16xbf16>
    %43 = vector.extract_strided_slice %39 {offsets = [0, 48], sizes = [8, 16], strides = [1, 1]} : vector<8x64xbf16> to vector<8x16xbf16>
    %44 = vector.shape_cast %40 : vector<8x16xbf16> to vector<1x8x16xbf16>
    %45 = vector.shape_cast %41 : vector<8x16xbf16> to vector<1x8x16xbf16>
    %46 = vector.shape_cast %42 : vector<8x16xbf16> to vector<1x8x16xbf16>
    %47 = vector.shape_cast %43 : vector<8x16xbf16> to vector<1x8x16xbf16>
    %48 = tpu.concatenate %44, %45, %46, %47 in 0 : vector<1x8x16xbf16>, vector<1x8x16xbf16>, vector<1x8x16xbf16>, vector<1x8x16xbf16> -> vector<4x8x16xbf16>
    %c0_9 = arith.constant 0 : index
    %c0_10 = arith.constant 0 : index
    %49 = vector.load %arg2[%c0_9, %c0_10] : memref<8x16xf32, #tpu.memory_space<vmem>>, vector<8x16xf32>
    %50 = vector.shape_cast %49 : vector<8x16xf32> to vector<1x8x16xf32>
    %c0_11 = arith.constant 0 : index
    %c0_12 = arith.constant 0 : index
    %51 = vector.load %arg3[%c0_11, %c0_12] : memref<8x16xf32, #tpu.memory_space<vmem>>, vector<8x16xf32>
    %52 = vector.shape_cast %51 : vector<8x16xf32> to vector<1x8x16xf32>
    %53 = vector.extract_strided_slice %27 {offsets = [0, 0, 8], sizes = [4, 8, 8], strides = [1, 1, 1]} : vector<4x8x16xf32> to vector<4x8x8xf32>
    %54 = vector.extract_strided_slice %27 {offsets = [0, 0, 0], sizes = [4, 8, 8], strides = [1, 1, 1]} : vector<4x8x16xf32> to vector<4x8x8xf32>
    %55 = tpu.concatenate %53, %54 in 2 : vector<4x8x8xf32>, vector<4x8x8xf32> -> vector<4x8x16xf32>
    %56 = vector.broadcast %50 : vector<1x8x16xf32> to vector<4x8x16xf32>
    %57 = arith.mulf %27, %56 : vector<4x8x16xf32>
    %58 = vector.broadcast %52 : vector<1x8x16xf32> to vector<4x8x16xf32>
    %59 = arith.mulf %55, %58 : vector<4x8x16xf32>
    %60 = arith.addf %57, %59 : vector<4x8x16xf32>
    %61 = arith.truncf %60 : vector<4x8x16xf32> to vector<4x8x16xbf16>
    %62 = vector.extract_strided_slice %37 {offsets = [0, 0, 8], sizes = [4, 8, 8], strides = [1, 1, 1]} : vector<4x8x16xf32> to vector<4x8x8xf32>
    %63 = vector.extract_strided_slice %37 {offsets = [0, 0, 0], sizes = [4, 8, 8], strides = [1, 1, 1]} : vector<4x8x16xf32> to vector<4x8x8xf32>
    %64 = tpu.concatenate %62, %63 in 2 : vector<4x8x8xf32>, vector<4x8x8xf32> -> vector<4x8x16xf32>
    %65 = vector.broadcast %50 : vector<1x8x16xf32> to vector<4x8x16xf32>
    %66 = arith.mulf %37, %65 : vector<4x8x16xf32>
    %67 = vector.broadcast %52 : vector<1x8x16xf32> to vector<4x8x16xf32>
    %68 = arith.mulf %64, %67 : vector<4x8x16xf32>
    %69 = arith.addf %66, %68 : vector<4x8x16xf32>
    %70 = arith.truncf %69 : vector<4x8x16xf32> to vector<4x8x16xbf16>
    "tpu.trace_start"() <{level = 10 : i32, message = "hsk,htk->hst"}> : () -> ()
    %cst_13 = arith.constant dense<0.000000e+00> : vector<4x8x8xf32>
    %71 = tpu.matmul %61, %70, %cst_13 {dimension_numbers = #tpu.dot_dimension_numbers<[2], [2], [1], [1], [0, 0, 0, 1, 1, 1], [0], [0]>} : vector<4x8x16xbf16>, vector<4x8x16xbf16>, vector<4x8x8xf32> -> vector<4x8x8xf32>
    "tpu.trace_stop"() : () -> ()
    %72 = tpu.iota {dimensions = array<i32: 0>} : vector<8x8xi32>
    %73 = tpu.iota {dimensions = array<i32: 1>} : vector<8x8xi32>
    %74 = arith.cmpi sge, %72, %73 : vector<8x8xi32>
    %75 = vector.shape_cast %74 : vector<8x8xi1> to vector<1x8x8xi1>
    %cst_14 = arith.constant 0xFF800000 : f32
    %76 = vector.shape_cast %75 : vector<1x8x8xi1> to vector<1x8x8xi1>
    %77 = vector.broadcast %76 : vector<1x8x8xi1> to vector<4x8x8xi1>
    %78 = vector.broadcast %cst_14 : f32 to vector<4x8x8xf32>
    %79 = arith.select %77, %71, %78 : vector<4x8x8xi1>, vector<4x8x8xf32>
    %cst_15 = arith.constant dense<0xFF800000> : vector<4x8xf32>
    %80 = vector.multi_reduction <maximumf>, %79, %cst_15 [2] : vector<4x8x8xf32> to vector<4x8xf32>
    %81 = vector.shape_cast %80 : vector<4x8xf32> to vector<4x8x1xf32>
    %82 = vector.broadcast %81 : vector<4x8x1xf32> to vector<4x8x8xf32>
    %83 = arith.subf %79, %82 : vector<4x8x8xf32>
    %84 = math.exp %83 : vector<4x8x8xf32>
    %cst_16 = arith.constant dense<0.000000e+00> : vector<4x8xf32>
    %85 = vector.multi_reduction <add>, %84, %cst_16 [2] : vector<4x8x8xf32> to vector<4x8xf32>
    %86 = vector.shape_cast %85 : vector<4x8xf32> to vector<4x8x1xf32>
    %87 = vector.broadcast %86 : vector<4x8x1xf32> to vector<4x8x8xf32>
    %88 = arith.divf %84, %87 : vector<4x8x8xf32>
    %89 = arith.truncf %88 : vector<4x8x8xf32> to vector<4x8x8xbf16>
    "tpu.trace_start"() <{level = 10 : i32, message = "hst,htk->hsk"}> : () -> ()
    %cst_17 = arith.constant dense<0.000000e+00> : vector<4x8x16xf32>
    %90 = tpu.matmul %89, %48, %cst_17 {dimension_numbers = #tpu.dot_dimension_numbers<[2], [1], [1], [2], [0, 0, 0, 1, 1, 2], [0], [0]>} : vector<4x8x8xbf16>, vector<4x8x16xbf16>, vector<4x8x16xf32> -> vector<4x8x16xf32>
    "tpu.trace_stop"() : () -> ()
    %91 = arith.truncf %90 : vector<4x8x16xf32> to vector<4x8x16xbf16>
    %92 = vector.extract_strided_slice %91 {offsets = [0, 0, 0], sizes = [1, 8, 16], strides = [1, 1, 1]} : vector<4x8x16xbf16> to vector<1x8x16xbf16>
    %93 = vector.shape_cast %92 : vector<1x8x16xbf16> to vector<8x16xbf16>
    %94 = vector.extract_strided_slice %91 {offsets = [1, 0, 0], sizes = [1, 8, 16], strides = [1, 1, 1]} : vector<4x8x16xbf16> to vector<1x8x16xbf16>
    %95 = vector.shape_cast %94 : vector<1x8x16xbf16> to vector<8x16xbf16>
    %96 = vector.extract_strided_slice %91 {offsets = [2, 0, 0], sizes = [1, 8, 16], strides = [1, 1, 1]} : vector<4x8x16xbf16> to vector<1x8x16xbf16>
    %97 = vector.shape_cast %96 : vector<1x8x16xbf16> to vector<8x16xbf16>
    %98 = vector.extract_strided_slice %91 {offsets = [3, 0, 0], sizes = [1, 8, 16], strides = [1, 1, 1]} : vector<4x8x16xbf16> to vector<1x8x16xbf16>
    %99 = vector.shape_cast %98 : vector<1x8x16xbf16> to vector<8x16xbf16>
    %100 = tpu.concatenate %93, %95, %97, %99 in 1 : vector<8x16xbf16>, vector<8x16xbf16>, vector<8x16xbf16>, vector<8x16xbf16> -> vector<8x64xbf16>
    %c0_18 = arith.constant 0 : index
    %c0_19 = arith.constant 0 : index
    %101 = vector.load %arg5[%c0_18, %c0_19] : memref<64x64xbf16, #tpu.memory_space<vmem>>, vector<64x64xbf16>
    %cst_20 = arith.constant dense<0.000000e+00> : vector<8x64xf32>
    %102 = tpu.matmul %100, %101, %cst_20 {dimension_numbers = #tpu.dot_dimension_numbers<[1], [0], [0], [1], [0, 0, 1, 1], [], []>} : vector<8x64xbf16>, vector<64x64xbf16>, vector<8x64xf32> -> vector<8x64xf32>
    %103 = arith.addf %1, %102 : vector<8x64xf32>
    %c0_21 = arith.constant 0 : index
    %c0_22 = arith.constant 0 : index
    %104 = vector.load %arg9[%c0_21, %c0_22] : memref<1x64xf32, #tpu.memory_space<vmem>>, vector<1x64xf32>
    %105 = arith.mulf %103, %103 : vector<8x64xf32>
    %cst_23 = arith.constant dense<0.000000e+00> : vector<8xf32>
    %106 = vector.multi_reduction <add>, %105, %cst_23 [1] : vector<8x64xf32> to vector<8xf32>
    %107 = vector.shape_cast %106 : vector<8xf32> to vector<8x1xf32>
    %cst_24 = arith.constant 6.400000e+01 : f32
    %108 = vector.broadcast %cst_24 : f32 to vector<8x1xf32>
    %109 = arith.divf %107, %108 : vector<8x1xf32>
    %cst_25 = arith.constant 9.99999974E-6 : f32
    %110 = vector.broadcast %cst_25 : f32 to vector<8x1xf32>
    %111 = arith.addf %109, %110 : vector<8x1xf32>
    %112 = math.rsqrt %111 : vector<8x1xf32>
    %113 = vector.broadcast %112 : vector<8x1xf32> to vector<8x64xf32>
    %114 = arith.mulf %103, %113 : vector<8x64xf32>
    %115 = vector.broadcast %104 : vector<1x64xf32> to vector<8x64xf32>
    %116 = arith.mulf %114, %115 : vector<8x64xf32>
    %117 = arith.truncf %116 : vector<8x64xf32> to vector<8x64xbf16>
    %c0_26 = arith.constant 0 : index
    %c0_27 = arith.constant 0 : index
    %118 = vector.load %arg6[%c0_26, %c0_27] : memref<64x384xbf16, #tpu.memory_space<vmem>>, vector<64x384xbf16>
    %cst_28 = arith.constant dense<0.000000e+00> : vector<8x384xf32>
    %119 = tpu.matmul %117, %118, %cst_28 {dimension_numbers = #tpu.dot_dimension_numbers<[1], [0], [0], [1], [0, 0, 1, 1], [], []>} : vector<8x64xbf16>, vector<64x384xbf16>, vector<8x384xf32> -> vector<8x384xf32>
    %120 = vector.extract_strided_slice %119 {offsets = [0, 0], sizes = [8, 192], strides = [1, 1]} : vector<8x384xf32> to vector<8x192xf32>
    %121 = vector.extract_strided_slice %119 {offsets = [0, 192], sizes = [8, 192], strides = [1, 1]} : vector<8x384xf32> to vector<8x192xf32>
    %cst_29 = arith.constant 0.000000e+00 : f32
    %122 = vector.broadcast %cst_29 : f32 to vector<8x192xf32>
    %123 = arith.subf %122, %120 : vector<8x192xf32>
    %124 = math.exp %123 : vector<8x192xf32>
    %cst_30 = arith.constant 1.000000e+00 : f32
    %125 = vector.broadcast %cst_30 : f32 to vector<8x192xf32>
    %126 = arith.addf %125, %124 : vector<8x192xf32>
    %127 = tpu.reciprocal %126 {approx = true} : vector<8x192xf32> -> vector<8x192xf32>
    %128 = arith.mulf %120, %127 : vector<8x192xf32>
    %129 = arith.mulf %128, %121 : vector<8x192xf32>
    %130 = arith.truncf %129 : vector<8x192xf32> to vector<8x192xbf16>
    %c0_31 = arith.constant 0 : index
    %c0_32 = arith.constant 0 : index
    %131 = vector.load %arg7[%c0_31, %c0_32] : memref<192x64xbf16, #tpu.memory_space<vmem>>, vector<192x64xbf16>
    %cst_33 = arith.constant dense<0.000000e+00> : vector<8x64xf32>
    %132 = tpu.matmul %130, %131, %cst_33 {dimension_numbers = #tpu.dot_dimension_numbers<[1], [0], [0], [1], [0, 0, 1, 1], [], []>} : vector<8x192xbf16>, vector<192x64xbf16>, vector<8x64xf32> -> vector<8x64xf32>
    %133 = arith.addf %103, %132 : vector<8x64xf32>
    %c0_34 = arith.constant 0 : index
    %c0_35 = arith.constant 0 : index
    %c0_36 = arith.constant 0 : index
    %134 = vector.load %arg10[%c0_34, %c0_35, %c0_36] : memref<1x8x64xf32, #tpu.memory_space<vmem>>, vector<1x8x64xf32>
    %135 = vector.shape_cast %134 : vector<1x8x64xf32> to vector<8x64xf32>
    %136 = vector.shape_cast %133 : vector<8x64xf32> to vector<1x8x64xf32>
    tpu.vector_store %arg10[%c0_34, %c0_35, %c0_36], %136 {strides = array<i32>} : memref<1x8x64xf32, #tpu.memory_space<vmem>>, vector<1x8x64xf32>,
    return
  }
  func.func @transform_0(%arg0: i32) -> (i32, i32, i32) {
    %c0_i32 = arith.constant 0 : i32
    %c0_i32_0 = arith.constant 0 : i32
    %c0_i32_1 = arith.constant 0 : i32
    return %arg0, %c0_i32, %c0_i32_0 : i32, i32, i32
  }
  func.func @transform_1(%arg0: i32) -> (i32, i32) {
    %c0_i32 = arith.constant 0 : i32
    %c0_i32_0 = arith.constant 0 : i32
    %c0_i32_1 = arith.constant 0 : i32
    return %c0_i32, %c0_i32_0 : i32, i32
  }
  func.func @transform_2(%arg0: i32) -> (i32, i32) {
    %c0_i32 = arith.constant 0 : i32
    %c0_i32_0 = arith.constant 0 : i32
    %c0_i32_1 = arith.constant 0 : i32
    return %c0_i32, %c0_i32_0 : i32, i32
  }
  func.func @transform_3(%arg0: i32) -> (i32, i32) {
    %c0_i32 = arith.constant 0 : i32
    %c0_i32_0 = arith.constant 0 : i32
    %c0_i32_1 = arith.constant 0 : i32
    return %c0_i32, %c0_i32_0 : i32, i32
  }
  func.func @transform_4(%arg0: i32) -> (i32, i32) {
    %c0_i32 = arith.constant 0 : i32
    %c0_i32_0 = arith.constant 0 : i32
    %c0_i32_1 = arith.constant 0 : i32
    return %c0_i32, %c0_i32_0 : i32, i32
  }
  func.func @transform_5(%arg0: i32) -> (i32, i32) {
    %c0_i32 = arith.constant 0 : i32
    %c0_i32_0 = arith.constant 0 : i32
    %c0_i32_1 = arith.constant 0 : i32
    return %c0_i32, %c0_i32_0 : i32, i32
  }
  func.func @transform_6(%arg0: i32) -> (i32, i32) {
    %c0_i32 = arith.constant 0 : i32
    %c0_i32_0 = arith.constant 0 : i32
    %c0_i32_1 = arith.constant 0 : i32
    return %c0_i32, %c0_i32_0 : i32, i32
  }
  func.func @transform_7(%arg0: i32) -> (i32, i32) {
    %c0_i32 = arith.constant 0 : i32
    %c0_i32_0 = arith.constant 0 : i32
    %c0_i32_1 = arith.constant 0 : i32
    return %c0_i32, %c0_i32_0 : i32, i32
  }
  func.func @transform_8(%arg0: i32) -> (i32, i32) {
    %c0_i32 = arith.constant 0 : i32
    %c0_i32_0 = arith.constant 0 : i32
    %c0_i32_1 = arith.constant 0 : i32
    return %c0_i32, %c0_i32_0 : i32, i32
  }
  func.func @transform_9(%arg0: i32) -> (i32, i32, i32) {
    %c0_i32 = arith.constant 0 : i32
    %c0_i32_0 = arith.constant 0 : i32
    %c0_i32_1 = arith.constant 0 : i32
    return %arg0, %c0_i32, %c0_i32_0 : i32, i32, i32
  }
}

</mosaic_0001>

<llo_original>
// kernel: tpu_custom_call.1
$region0: #{tpu_custom_call.1}
  #allocation0 [shape = 'u32[]', space=smem, size = 0x4, offset = 0x4, fixed_abs, tag = 'smem constant byte address 0x4 - core index']
  #allocation1 [shape = 'u32[72,128]{1,0:T(1,128)}', space=vmem, size = 0x9000, scoped, tag = 'internal scratch']
  %s0 = inlined_call_operand.hbm [shape: f32[8,64], index: 0, kind: input, shape index: {}]
  %s1 = inlined_call_operand.hbm [shape: bf16[8,64], index: 1, kind: input, shape index: {}]
  %s2 = inlined_call_operand.hbm [shape: f32[4,8,16], index: 2, kind: output, shape index: {0}]
  %s3 = inlined_call_operand.hbm [shape: bf16[4,8,16], index: 3, kind: output, shape index: {1}]
  %s4 = inlined_call_operand.hbm [shape: bf16[8,64], index: 4, kind: output, shape index: {2}]
  %5 = xla_tuple %s2, %s3, %s4
  %s6 = sld [smem:[#allocation0]]
  $region42: #{tpu_custom_call.1} parent=0
    _
  %s8 = ssub.s32 1, %s6
  %s9 = scalar_select 0, %s8, %s6
  $region1: #{tpu_custom_call.1} parent=0
    #allocation2 [shape = 'u8[4096]{0}', space=vmem, size = 0x1000, scoped, tag = 'input window, operand 0, single buffered']
    #allocation3 [shape = 's32[1]{0}', space=sflag, size = 0x4, scoped, tag = 'scoped memory for tpu_custom_call.1']
    #allocation4 [shape = 's32[1]{0}', space=sflag, size = 0x4, scoped, tag = 'scoped memory for tpu_custom_call.1']
    #allocation5 [shape = 'u8[2048]{0}', space=vmem, size = 0x800, scoped, tag = 'input window, operand 1, single buffered']
    #allocation6 [shape = 's32[1]{0}', space=sflag, size = 0x4, scoped, tag = 'scoped memory for tpu_custom_call.1']
    #allocation7 [shape = 'u8[16384]{0}', space=vmem, size = 0x4000, scoped, tag = 'output window, operand 0, single buffered']
    #allocation8 [shape = 'u8[8192]{0}', space=vmem, size = 0x2000, scoped, tag = 'output window, operand 1, single buffered']
    #allocation9 [shape = 's32[1]{0}', space=sflag, size = 0x4, scoped, tag = 'scoped memory for tpu_custom_call.1']
    #allocation10 [shape = 'u8[2048]{0}', space=vmem, size = 0x800, scoped, tag = 'output window, operand 2, single buffered']
    %10 = vsyncpa [#allocation3], 0
    %11 = vsyncpa [#allocation6], 0
    %12 = vsyncpa [#allocation4], 0
    %13 = vsyncpa [#allocation9], 0
    // Predicated region
    $region2: #{tpu_custom_call.1} parent=1 // pred_check
      _
    $region3: #{tpu_custom_call.1} parent=1 // pred_check_branch
      %15 = sbr.rel (0) target = $region5
    $region4: #{tpu_custom_call.1} parent=1 // pred_region
      %17 = vsyncadd [#allocation3], 0
      %s19 = sshll.u32 %s0, 4
      %s20 = int_to_ptr.hbm [resolvable:$true] %s19
      %s21 = sshll.u32 [#allocation2], 4
      %s22 = int_to_ptr.vmem [resolvable:$true] %s21
      %24 = dma.hbm_to_vmem [thread:$0]  %s20, 128, %s22, [#allocation3]
    $region5: #{tpu_custom_call.1} parent=1 // pred_fallthru
      _
    // Predicated region
    $region6: #{tpu_custom_call.1} parent=1 // pred_check
      _
    $region7: #{tpu_custom_call.1} parent=1 // pred_check_branch
      %26 = sbr.rel (0) target = $region9
    $region8: #{tpu_custom_call.1} parent=1 // pred_region
      %28 = vsyncadd [#allocation6], 0
      %s30 = sshll.u32 %s1, 4
      %s31 = int_to_ptr.hbm [resolvable:$true] %s30
      %s32 = sshll.u32 [#allocation5], 4
      %s33 = int_to_ptr.vmem [resolvable:$true] %s32
      %35 = dma.hbm_to_vmem [thread:$0]  %s31, 64, %s33, [#allocation6]
    $region9: #{tpu_custom_call.1} parent=1 // pred_fallthru
      _
    // Predicated region
    $region10: #{tpu_custom_call.1} parent=1 // pred_check
      _
    $region11: #{tpu_custom_call.1} parent=1 // pred_check_branch
      %37 = sbr.rel (0) target = $region13
    $region12: #{tpu_custom_call.1} parent=1 // pred_region
      %39 = dma.done [#allocation3], 128
    $region13: #{tpu_custom_call.1} parent=1 // pred_fallthru
      _
    // Predicated region
    $region14: #{tpu_custom_call.1} parent=1 // pred_check
      _
    $region15: #{tpu_custom_call.1} parent=1 // pred_check_branch
      %41 = sbr.rel (0) target = $region17
    $region16: #{tpu_custom_call.1} parent=1 // pred_region
      %43 = dma.done [#allocation6], 64
    $region17: #{tpu_custom_call.1} parent=1 // pred_fallthru
      _
    %v45 = vld [vmem:[#allocation2] sm:$0xff]
    %47 = vrot.lane.b32.xlu0 %v45, 112
    %v48 = vpop.permute.xlu0 %47
    %50 = vrot.lane.b32.xlu0 %v45, 96
    %v51 = vpop.permute.xlu0 %50
    %53 = vrot.lane.b32.xlu0 %v45, 80
    %v54 = vpop.permute.xlu0 %53
    %v56 = vrot.slane %v51, 4
    %vm57 = vcmask 1047556
    %v58 = vsel %vm57, %v56, %v45
    %v59 = vrot.slane %v45, 4
    %v60 = vsel %vm57, %v51, %v59
    %v62 = vunpack.c.l.s4 1983009808
    %v63 = vunpack.c.0.s8 %v62
    %v64 = vperm.slane %v58, %v63
    %v66 = vunpack.c.l.s4 1983009808
    %v67 = vunpack.c.0.s8 %v66
    %v68 = vperm.slane %v60, %v67
    %v69 = vrot.slane %v54, 4
    %v70 = vsel %vm57, %v69, %v48
    %v71 = vrot.slane %v48, 4
    %v72 = vsel %vm57, %v54, %v71
    %v74 = vunpack.c.l.s4 1983009808
    %v75 = vunpack.c.0.s8 %v74
    %v76 = vperm.slane %v70, %v75
    %v78 = vunpack.c.l.s4 1983009808
    %v79 = vunpack.c.0.s8 %v78
    %v80 = vperm.slane %v72, %v79
    %v81 = vrot.slane %v76, 4
    %v82 = vsel %vm57, %v81, %v64
    %v83 = vrot.slane %v64, 4
    %v84 = vsel %vm57, %v76, %v83
    %v86 = vunpack.c.l.s4 1934713408
    %v87 = vunpack.c.0.s8 %v86
    %v88 = vperm.slane %v82, %v87
    %v90 = vunpack.c.l.s4 1934713408
    %v91 = vunpack.c.0.s8 %v90
    %v92 = vperm.slane %v84, %v91
    %v93 = vrot.slane %v80, 4
    %v94 = vsel %vm57, %v93, %v68
    %v95 = vrot.slane %v68, 4
    %v96 = vsel %vm57, %v80, %v95
    %v98 = vunpack.c.l.s4 1934713408
    %v99 = vunpack.c.0.s8 %v98
    %v100 = vperm.slane %v94, %v99
    %v102 = vunpack.c.l.s4 1934713408
    %v103 = vunpack.c.0.s8 %v102
    %v104 = vperm.slane %v96, %v103
    %v105 = vrot.slane %v88, 4
    %v106 = vsel %vm57, 0.0, %v105
    %v107 = vrot.slane %v92, 4
    %v108 = vsel %vm57, 0.0, %v107
    %v109 = vrot.slane %v100, 4
    %v110 = vsel %vm57, 0.0, %v109
    %v111 = vrot.slane %v104, 4
    %v112 = vsel %vm57, 0.0, %v111
    %v113 = vsel %vm57, %v107, %v88
    %v115 = vunpack.c.l.s4 1983009808
    %v116 = vunpack.c.0.s8 %v115
    %v117 = vperm.slane %v113, %v116
    %v118 = vrot.slane %v108, 4
    %v119 = vsel %vm57, %v118, %v106
    %v121 = vunpack.c.l.s4 1983009808
    %v122 = vunpack.c.0.s8 %v121
    %v123 = vperm.slane %v119, %v122
    %v124 = vsel %vm57, %v111, %v100
    %v126 = vunpack.c.l.s4 1983009808
    %v127 = vunpack.c.0.s8 %v126
    %v128 = vperm.slane %v124, %v127
    %v129 = vrot.slane %v112, 4
    %v130 = vsel %vm57, %v129, %v110
    %v132 = vunpack.c.l.s4 1983009808
    %v133 = vunpack.c.0.s8 %v132
    %v134 = vperm.slane %v130, %v133
    %v135 = vrot.slane %v123, 4
    %v136 = vsel %vm57, %v135, %v117
    %v137 = vrot.slane %v117, 4
    %v138 = vsel %vm57, %v123, %v137
    %v140 = vunpack.c.l.s4 1934713408
    %v141 = vunpack.c.0.s8 %v140
    %v142 = vperm.slane %v136, %v141
    %v144 = vunpack.c.l.s4 1934713408
    %v145 = vunpack.c.0.s8 %v144
    %v146 = vperm.slane %v138, %v145
    %v147 = vrot.slane %v134, 4
    %v148 = vsel %vm57, %v147, %v128
    %v149 = vrot.slane %v128, 4
    %v150 = vsel %vm57, %v134, %v149
    %v152 = vunpack.c.l.s4 1934713408
    %v153 = vunpack.c.0.s8 %v152
    %v154 = vperm.slane %v148, %v153
    %v156 = vunpack.c.l.s4 1934713408
    %v157 = vunpack.c.0.s8 %v156
    %v158 = vperm.slane %v150, %v157
    %v159 = vrot.slane %v154, 4
    %v160 = vsel %vm57, %v159, %v142
    %v161 = vrot.slane %v142, 4
    %v162 = vsel %vm57, %v154, %v161
    %v163 = vrot.slane %v158, 4
    %v164 = vsel %vm57, %v163, %v146
    %v165 = vrot.slane %v146, 4
    %v166 = vsel %vm57, %v158, %v165
    %vm167 = vcmask 130048
    %168 = vst.msk [vmem:[#allocation7] sm:$0xff] %vm167, %v160
    %169 = vst.msk [vmem:[#allocation7 + $0x8] sm:$0xff] %vm167, %v162
    %170 = vst.msk [vmem:[#allocation7 + $0x10] sm:$0xff] %vm167, %v164
    %171 = vst.msk [vmem:[#allocation7 + $0x18] sm:$0xff] %vm167, %v166
    %v172 = vld [vmem:[#allocation5] sm:$0xf]
    %174 = vrot.lane.b32.xlu0 %v172, 112
    %v175 = vpop.permute.xlu0 %174
    %176 = vrot.lane.b32.xlu0 %v172, 96
    %v177 = vpop.permute.xlu0 %176
    %178 = vrot.lane.b32.xlu0 %v172, 80
    %v179 = vpop.permute.xlu0 %178
    %v182 = vpack.i.b16 %v175, %v172
    %v183 = vshrl.u32 %v172, 16
    %v184 = vshrl.u32 %v175, 16
    %v185 = vpack.i.b16 %v184, %v183
    %v188 = vpack.i.b16 %v179, %v177
    %v189 = vshrl.u32 %v177, 16
    %v190 = vshrl.u32 %v179, 16
    %v191 = vpack.i.b16 %v190, %v189
    %v194 = vunpack.c.l.s4 1983009808
    %v195 = vunpack.c.0.s8 %v194
    %v196 = vperm.slane %v182, %v195
    %v199 = vunpack.c.l.s4 1983009808
    %v200 = vunpack.c.0.s8 %v199
    %v201 = vperm.slane %v188, %v200
    %v202 = vrot.slane %v201, 4
    %vm203 = vcmask 1047556
    %v204 = vsel %vm203, %v202, %v196
    %v205 = vrot.slane %v196, 4
    %v206 = vsel %vm203, %v201, %v205
    %v208 = vunpack.c.l.s4 1934713408
    %v209 = vunpack.c.0.s8 %v208
    %v210 = vperm.slane %v204, %v209
    %v212 = vunpack.c.l.s4 1934713408
    %v213 = vunpack.c.0.s8 %v212
    %v214 = vperm.slane %v206, %v213
    %v215 = vrot.slane %v210, 4
    %v216 = vsel %vm203, 0, %v215
    %v217 = vrot.slane %v214, 4
    %v218 = vsel %vm203, 0, %v217
    %v221 = vunpack.c.l.s4 1983009808
    %v222 = vunpack.c.0.s8 %v221
    %v223 = vperm.slane %v185, %v222
    %v226 = vunpack.c.l.s4 1983009808
    %v227 = vunpack.c.0.s8 %v226
    %v228 = vperm.slane %v191, %v227
    %v229 = vrot.slane %v228, 4
    %v230 = vsel %vm203, %v229, %v223
    %v231 = vrot.slane %v223, 4
    %v232 = vsel %vm203, %v228, %v231
    %v234 = vunpack.c.l.s4 1934713408
    %v235 = vunpack.c.0.s8 %v234
    %v236 = vperm.slane %v230, %v235
    %v238 = vunpack.c.l.s4 1934713408
    %v239 = vunpack.c.0.s8 %v238
    %v240 = vperm.slane %v232, %v239
    %v241 = vrot.slane %v236, 4
    %v242 = vsel %vm203, 0, %v241
    %v243 = vrot.slane %v240, 4
    %v244 = vsel %vm203, 0, %v243
    %v245 = vsel %vm203, %v217, %v210
    %v247 = vunpack.c.l.s4 1983009808
    %v248 = vunpack.c.0.s8 %v247
    %v249 = vperm.slane %v245, %v248
    %v250 = vrot.slane %v218, 4
    %v251 = vsel %vm203, %v250, %v216
    %v253 = vunpack.c.l.s4 1983009808
    %v254 = vunpack.c.0.s8 %v253
    %v255 = vperm.slane %v251, %v254
    %v256 = vrot.slane %v255, 4
    %v257 = vsel %vm203, %v256, %v249
    %v259 = vunpack.c.l.s4 1934713408
    %v260 = vunpack.c.0.s8 %v259
    %v261 = vperm.slane %v257, %v260
    %v262 = vrot.slane %v261, 4
    %v263 = vsel %vm203, 0, %v262
    %v264 = vsel %vm203, %v243, %v236
    %v266 = vunpack.c.l.s4 1983009808
    %v267 = vunpack.c.0.s8 %v266
    %v268 = vperm.slane %v264, %v267
    %v269 = vrot.slane %v244, 4
    %v270 = vsel %vm203, %v269, %v242
    %v272 = vunpack.c.l.s4 1983009808
    %v273 = vunpack.c.0.s8 %v272
    %v274 = vperm.slane %v270, %v273
    %v275 = vrot.slane %v274, 4
    %v276 = vsel %vm203, %v275, %v268
    %v278 = vunpack.c.l.s4 1934713408
    %v279 = vunpack.c.0.s8 %v278
    %v280 = vperm.slane %v276, %v279
    %v281 = vrot.slane %v280, 4
    %v282 = vsel %vm203, 0, %v281
    %v285 = vpack.i.b16 %v280, %v261
    %v287 = vshrl.u32 %v261, 16
    %v288 = vshrl.u32 %v280, 16
    %v289 = vpack.i.b16 %v288, %v287
    %v293 = vpack.i.b16 %v282, %v263
    %v295 = vshrl.u32 %v263, 16
    %v296 = vshrl.u32 %v282, 16
    %v297 = vpack.i.b16 %v296, %v295
    %vm299 = vcmask 125952
    %300 = vst.msk [vmem:[#allocation8] sm:$0xf] %vm299, %v285
    %301 = vst.msk [vmem:[#allocation8 + $0x4] sm:$0xf] %vm299, %v289
    %302 = vst.msk [vmem:[#allocation8 + $0x8] sm:$0xf] %vm299, %v293
    %303 = vst.msk [vmem:[#allocation8 + $0xc] sm:$0xf] %vm299, %v297
    %v304 = vld [vmem:[#allocation5] sm:$0xf]
    %306 = vrot.lane.b32.xlu0 %v304, 112
    %v307 = vpop.permute.xlu0 %306
    %308 = vrot.lane.b32.xlu0 %v304, 96
    %v309 = vpop.permute.xlu0 %308
    %310 = vrot.lane.b32.xlu0 %v304, 80
    %v311 = vpop.permute.xlu0 %310
    %v314 = vpack.i.b16 %v307, %v304
    %v315 = vshrl.u32 %v304, 16
    %v316 = vshrl.u32 %v307, 16
    %v317 = vpack.i.b16 %v316, %v315
    %v320 = vpack.i.b16 %v311, %v309
    %v321 = vshrl.u32 %v309, 16
    %v322 = vshrl.u32 %v311, 16
    %v323 = vpack.i.b16 %v322, %v321
    %v326 = vunpack.c.l.s4 1983009808
    %v327 = vunpack.c.0.s8 %v326
    %v328 = vperm.slane %v314, %v327
    %v331 = vunpack.c.l.s4 1983009808
    %v332 = vunpack.c.0.s8 %v331
    %v333 = vperm.slane %v320, %v332
    %v334 = vrot.slane %v333, 4
    %v335 = vsel %vm203, %v334, %v328
    %v336 = vrot.slane %v328, 4
    %v337 = vsel %vm203, %v333, %v336
    %v339 = vunpack.c.l.s4 1934713408
    %v340 = vunpack.c.0.s8 %v339
    %v341 = vperm.slane %v335, %v340
    %v343 = vunpack.c.l.s4 1934713408
    %v344 = vunpack.c.0.s8 %v343
    %v345 = vperm.slane %v337, %v344
    %v346 = vrot.slane %v341, 4
    %v347 = vsel %vm203, 0, %v346
    %v348 = vrot.slane %v345, 4
    %v349 = vsel %vm203, 0, %v348
    %v352 = vunpack.c.l.s4 1983009808
    %v353 = vunpack.c.0.s8 %v352
    %v354 = vperm.slane %v317, %v353
    %v357 = vunpack.c.l.s4 1983009808
    %v358 = vunpack.c.0.s8 %v357
    %v359 = vperm.slane %v323, %v358
    %v360 = vrot.slane %v359, 4
    %v361 = vsel %vm203, %v360, %v354
    %v362 = vrot.slane %v354, 4
    %v363 = vsel %vm203, %v359, %v362
    %v365 = vunpack.c.l.s4 1934713408
    %v366 = vunpack.c.0.s8 %v365
    %v367 = vperm.slane %v361, %v366
    %v369 = vunpack.c.l.s4 1934713408
    %v370 = vunpack.c.0.s8 %v369
    %v371 = vperm.slane %v363, %v370
    %v372 = vrot.slane %v367, 4
    %v373 = vsel %vm203, 0, %v372
    %v374 = vrot.slane %v371, 4
    %v375 = vsel %vm203, 0, %v374
    %v376 = vsel %vm203, %v348, %v341
    %v378 = vunpack.c.l.s4 1983009808
    %v379 = vunpack.c.0.s8 %v378
    %v380 = vperm.slane %v376, %v379
    %v381 = vrot.slane %v349, 4
    %v382 = vsel %vm203, %v381, %v347
    %v384 = vunpack.c.l.s4 1983009808
    %v385 = vunpack.c.0.s8 %v384
    %v386 = vperm.slane %v382, %v385
    %v387 = vrot.slane %v386, 4
    %v388 = vsel %vm203, %v387, %v380
    %v390 = vunpack.c.l.s4 1934713408
    %v391 = vunpack.c.0.s8 %v390
    %v392 = vperm.slane %v388, %v391
    %v393 = vrot.slane %v392, 4
    %v394 = vsel %vm203, 0, %v393
    %v395 = vsel %vm203, %v374, %v367
    %v397 = vunpack.c.l.s4 1983009808
    %v398 = vunpack.c.0.s8 %v397
    %v399 = vperm.slane %v395, %v398
    %v400 = vrot.slane %v375, 4
    %v401 = vsel %vm203, %v400, %v373
    %v403 = vunpack.c.l.s4 1983009808
    %v404 = vunpack.c.0.s8 %v403
    %v405 = vperm.slane %v401, %v404
    %v406 = vrot.slane %v405, 4
    %v407 = vsel %vm203, %v406, %v399
    %v409 = vunpack.c.l.s4 1934713408
    %v410 = vunpack.c.0.s8 %v409
    %v411 = vperm.slane %v407, %v410
    %v412 = vrot.slane %v411, 4
    %v413 = vsel %vm203, 0, %v412
    %v416 = vpack.i.b16 %v411, %v392
    %v417 = vshrl.u32 %v392, 16
    %v418 = vshrl.u32 %v411, 16
    %v419 = vpack.i.b16 %v418, %v417
    %v422 = vpack.i.b16 %v413, %v394
    %v423 = vshrl.u32 %v394, 16
    %v424 = vshrl.u32 %v413, 16
    %v425 = vpack.i.b16 %v424, %v423
    %v428 = vpack.i.b16 %v419, %v416
    %v429 = vshrl.u32 %v416, 16
    %v430 = vshrl.u32 %v419, 16
    %v431 = vpack.i.b16 %v430, %v429
    %v434 = vpack.i.b16 %v425, %v422
    %v435 = vshrl.u32 %v422, 16
    %v436 = vshrl.u32 %v425, 16
    %v437 = vpack.i.b16 %v436, %v435
    %v440 = vunpack.c.l.s4 1983009808
    %v441 = vunpack.c.0.s8 %v440
    %v442 = vperm.slane %v428, %v441
    %v445 = vunpack.c.l.s4 1983009808
    %v446 = vunpack.c.0.s8 %v445
    %v447 = vperm.slane %v434, %v446
    %v448 = vrot.slane %v447, 4
    %v449 = vsel %vm203, %v448, %v442
    %v450 = vrot.slane %v442, 4
    %v451 = vsel %vm203, %v447, %v450
    %v453 = vunpack.c.l.s4 1934713408
    %v454 = vunpack.c.0.s8 %v453
    %v455 = vperm.slane %v449, %v454
    %v457 = vunpack.c.l.s4 1934713408
    %v458 = vunpack.c.0.s8 %v457
    %v459 = vperm.slane %v451, %v458
    %v460 = vrot.slane %v455, 4
    %v461 = vsel %vm203, 0, %v460
    %v462 = vrot.slane %v459, 4
    %v463 = vsel %vm203, 0, %v462
    %v466 = vunpack.c.l.s4 1983009808
    %v467 = vunpack.c.0.s8 %v466
    %v468 = vperm.slane %v431, %v467
    %v471 = vunpack.c.l.s4 1983009808
    %v472 = vunpack.c.0.s8 %v471
    %v473 = vperm.slane %v437, %v472
    %v474 = vrot.slane %v473, 4
    %v475 = vsel %vm203, %v474, %v468
    %v476 = vrot.slane %v468, 4
    %v477 = vsel %vm203, %v473, %v476
    %v479 = vunpack.c.l.s4 1934713408
    %v480 = vunpack.c.0.s8 %v479
    %v481 = vperm.slane %v475, %v480
    %v483 = vunpack.c.l.s4 1934713408
    %v484 = vunpack.c.0.s8 %v483
    %v485 = vperm.slane %v477, %v484
    %v486 = vrot.slane %v481, 4
    %v487 = vsel %vm203, 0, %v486
    %v488 = vrot.slane %v485, 4
    %v489 = vsel %vm203, 0, %v488
    %v490 = vsel %vm203, %v462, %v455
    %v492 = vunpack.c.l.s4 1983009808
    %v493 = vunpack.c.0.s8 %v492
    %v494 = vperm.slane %v490, %v493
    %v495 = vrot.slane %v463, 4
    %v496 = vsel %vm203, %v495, %v461
    %v498 = vunpack.c.l.s4 1983009808
    %v499 = vunpack.c.0.s8 %v498
    %v500 = vperm.slane %v496, %v499
    %v501 = vrot.slane %v500, 4
    %v502 = vsel %vm203, %v501, %v494
    %v504 = vunpack.c.l.s4 1934713408
    %v505 = vunpack.c.0.s8 %v504
    %v506 = vperm.slane %v502, %v505
    %v507 = vrot.slane %v506, 4
    %v508 = vsel %vm203, 0, %v507
    %v509 = vsel %vm203, %v488, %v481
    %v511 = vunpack.c.l.s4 1983009808
    %v512 = vunpack.c.0.s8 %v511
    %v513 = vperm.slane %v509, %v512
    %v514 = vrot.slane %v489, 4
    %v515 = vsel %vm203, %v514, %v487
    %v517 = vunpack.c.l.s4 1983009808
    %v518 = vunpack.c.0.s8 %v517
    %v519 = vperm.slane %v515, %v518
    %v520 = vrot.slane %v519, 4
    %v521 = vsel %vm203, %v520, %v513
    %v523 = vunpack.c.l.s4 1934713408
    %v524 = vunpack.c.0.s8 %v523
    %v525 = vperm.slane %v521, %v524
    %v526 = vrot.slane %v525, 4
    %v527 = vsel %vm203, 0, %v526
    %v530 = vpack.i.b16 %v525, %v506
    %v531 = vshrl.u32 %v506, 16
    %v532 = vshrl.u32 %v525, 16
    %v533 = vpack.i.b16 %v532, %v531
    %v536 = vpack.i.b16 %v527, %v508
    %v537 = vshrl.u32 %v508, 16
    %v538 = vshrl.u32 %v527, 16
    %v539 = vpack.i.b16 %v538, %v537
    %v540 = vunpack.c.l.b16 %v533
    %v541 = vpack.c.b16 %v540, %v540
    %542 = vrot.lane.b32.xlu0 %v541, 16
    %v543 = vpop.permute.xlu0 %542
    %v544 = vunpack.c.l.b16 %v536
    %v545 = vpack.c.b16 %v544, %v544
    %546 = vrot.lane.b32.xlu0 %v545, 32
    %v547 = vpop.permute.xlu0 %546
    %v548 = vunpack.c.l.b16 %v539
    %v549 = vpack.c.b16 %v548, %v548
    %550 = vrot.lane.b32.xlu0 %v549, 48
    %v551 = vpop.permute.xlu0 %550
    %v554 = vsel %vm167, %v530, %v543
    %vm555 = vcmask 261120
    %v557 = vsel %vm555, %v554, %v547
    %vm558 = vcmask 392192
    %v560 = vsel %vm558, %v557, %v551
    %vm562 = vcmask 519168
    %563 = vst.msk [vmem:[#allocation10] sm:$0xf] %vm562, %v560
    // Predicated region
    $region18: #{tpu_custom_call.1} parent=1 // pred_check
      _
    $region19: #{tpu_custom_call.1} parent=1 // pred_check_branch
      %565 = sbr.rel (0) target = $region21
    $region20: #{tpu_custom_call.1} parent=1 // pred_region
      %567 = vsyncadd [#allocation4], 0
      %s568 = sshll.u32 [#allocation7], 4
      %s569 = int_to_ptr.vmem [resolvable:$true] %s568
      %s570 = sshll.u32 %s2, 4
      %s571 = int_to_ptr.hbm [resolvable:$true] %s570
      %576 = dma.vmem_to_hbm [thread:$0]  %s569, 512, %s571, [#allocation4], 128, 128, 8
    $region21: #{tpu_custom_call.1} parent=1 // pred_fallthru
      _
    // Predicated region
    $region22: #{tpu_custom_call.1} parent=1 // pred_check
      _
    $region23: #{tpu_custom_call.1} parent=1 // pred_check_branch
      %578 = sbr.rel (0) target = $region25
    $region24: #{tpu_custom_call.1} parent=1 // pred_region
      %580 = vsyncadd [#allocation9], 0
      %s581 = sshll.u32 [#allocation8], 4
      %s582 = int_to_ptr.vmem [resolvable:$true] %s581
      %s583 = sshll.u32 %s3, 4
      %s584 = int_to_ptr.hbm [resolvable:$true] %s583
      %589 = dma.vmem_to_hbm [thread:$0]  %s582, 256, %s584, [#allocation9], 64, 64, 4
    $region25: #{tpu_custom_call.1} parent=1 // pred_fallthru
      _
    // Predicated region
    $region26: #{tpu_custom_call.1} parent=1 // pred_check
      _
    $region27: #{tpu_custom_call.1} parent=1 // pred_check_branch
      %591 = sbr.rel (0) target = $region29
    $region28: #{tpu_custom_call.1} parent=1 // pred_region
      %593 = vsyncadd [#allocation9], 0
      %s595 = sshll.u32 [#allocation10], 4
      %s596 = int_to_ptr.vmem [resolvable:$true] %s595
      %s597 = sshll.u32 %s4, 4
      %s598 = int_to_ptr.hbm [resolvable:$true] %s597
      %600 = dma.vmem_to_hbm [thread:$0]  %s596, 64, %s598, [#allocation9]
    $region29: #{tpu_custom_call.1} parent=1 // pred_fallthru
      _
    // Predicated region
    $region30: #{tpu_custom_call.1} parent=1 // pred_check
      _
    $region31: #{tpu_custom_call.1} parent=1 // pred_check_branch
      %602 = sbr.rel (0) target = $region33
    $region32: #{tpu_custom_call.1} parent=1 // pred_region
      %604 = dma.done [#allocation4], 512
    $region33: #{tpu_custom_call.1} parent=1 // pred_fallthru
      _
    // Predicated region
    $region34: #{tpu_custom_call.1} parent=1 // pred_check
      _
    $region35: #{tpu_custom_call.1} parent=1 // pred_check_branch
      %606 = sbr.rel (0) target = $region37
    $region36: #{tpu_custom_call.1} parent=1 // pred_region
      %608 = dma.done [#allocation9], 256
    $region37: #{tpu_custom_call.1} parent=1 // pred_fallthru
      _
    // Predicated region
    $region38: #{tpu_custom_call.1} parent=1 // pred_check
      _
    $region39: #{tpu_custom_call.1} parent=1 // pred_check_branch
      %610 = sbr.rel (0) target = $region41
    $region40: #{tpu_custom_call.1} parent=1 // pred_region
      %612 = dma.done [#allocation9], 64
    $region41: #{tpu_custom_call.1} parent=1 // pred_fallthru
      _
    %613 = vsyncpa [#allocation3], 1
    %614 = vsyncpa [#allocation6], 1
    %615 = vsyncpa [#allocation4], 1
    %616 = vsyncpa [#allocation9], 1

// kernel: tpu_custom_call.1
$region0: #{tpu_custom_call.1}
  #allocation0 [shape = 'u32[]', space=smem, size = 0x4, offset = 0x4, fixed_abs, tag = 'smem constant byte address 0x4 - core index']
  #allocation1 [shape = 'u32[72,128]{1,0:T(1,128)}', space=vmem, size = 0x9000, scoped, tag = 'internal scratch']
  %s0 = inlined_call_operand.hbm [shape: f32[8,64], index: 0, kind: input, shape index: {}]
  %s1 = inlined_call_operand.hbm [shape: bf16[8,64], index: 1, kind: input, shape index: {}]
  %s2 = inlined_call_operand.hbm [shape: f32[4,8,16], index: 2, kind: output, shape index: {0}]
  %s3 = inlined_call_operand.hbm [shape: bf16[4,8,16], index: 3, kind: output, shape index: {1}]
  %s4 = inlined_call_operand.hbm [shape: bf16[8,64], index: 4, kind: output, shape index: {2}]
  %5 = xla_tuple %s2, %s3, %s4
  %s6 = sld [smem:[#allocation0]]
  $region42: #{tpu_custom_call.1} parent=0
    _
  %s8 = ssub.s32 1, %s6
  %s9 = scalar_select 0, %s8, %s6
  $region1: #{tpu_custom_call.1} parent=0
    #allocation2 [shape = 'u8[4096]{0}', space=vmem, size = 0x1000, scoped, tag = 'input window, operand 0, single buffered']
    #allocation3 [shape = 's32[1]{0}', space=sflag, size = 0x4, scoped, tag = 'scoped memory for tpu_custom_call.1']
    #allocation4 [shape = 's32[1]{0}', space=sflag, size = 0x4, scoped, tag = 'scoped memory for tpu_custom_call.1']
    #allocation5 [shape = 'u8[2048]{0}', space=vmem, size = 0x800, scoped, tag = 'input window, operand 1, single buffered']
    #allocation6 [shape = 's32[1]{0}', space=sflag, size = 0x4, scoped, tag = 'scoped memory for tpu_custom_call.1']
    #allocation7 [shape = 'u8[16384]{0}', space=vmem, size = 0x4000, scoped, tag = 'output window, operand 0, single buffered']
    #allocation8 [shape = 'u8[8192]{0}', space=vmem, size = 0x2000, scoped, tag = 'output window, operand 1, single buffered']
    #allocation9 [shape = 's32[1]{0}', space=sflag, size = 0x4, scoped, tag = 'scoped memory for tpu_custom_call.1']
    #allocation10 [shape = 'u8[2048]{0}', space=vmem, size = 0x800, scoped, tag = 'output window, operand 2, single buffered']
    %10 = vsyncpa [#allocation3], 0
    %11 = vsyncpa [#allocation6], 0
    %12 = vsyncpa [#allocation4], 0
    %13 = vsyncpa [#allocation9], 0
    // Predicated region
    $region2: #{tpu_custom_call.1} parent=1 // pred_check
      _
    $region3: #{tpu_custom_call.1} parent=1 // pred_check_branch
      %15 = sbr.rel (0) target = $region5
    $region4: #{tpu_custom_call.1} parent=1 // pred_region
      %17 = vsyncadd [#allocation3], 0
      %s19 = sshll.u32 %s0, 4
      %s20 = int_to_ptr.hbm [resolvable:$true] %s19
      %s21 = sshll.u32 [#allocation2], 4
      %s22 = int_to_ptr.vmem [resolvable:$true] %s21
      %24 = dma.hbm_to_vmem [thread:$0]  %s20, 128, %s22, [#allocation3]
    $region5: #{tpu_custom_call.1} parent=1 // pred_fallthru
      _
    // Predicated region
    $region6: #{tpu_custom_call.1} parent=1 // pred_check
      _
    $region7: #{tpu_custom_call.1} parent=1 // pred_check_branch
      %26 = sbr.rel (0) target = $region9
    $region8: #{tpu_custom_call.1} parent=1 // pred_region
      %28 = vsyncadd [#allocation6], 0
      %s30 = sshll.u32 %s1, 4
      %s31 = int_to_ptr.hbm [resolvable:$true] %s30
      %s32 = sshll.u32 [#allocation5], 4
      %s33 = int_to_ptr.vmem [resolvable:$true] %s32
      %35 = dma.hbm_to_vmem [thread:$0]  %s31, 64, %s33, [#allocation6]
    $region9: #{tpu_custom_call.1} parent=1 // pred_fallthru
      _
    // Predicated region
    $region10: #{tpu_custom_call.1} parent=1 // pred_check
      _
    $region11: #{tpu_custom_call.1} parent=1 // pred_check_branch
      %37 = sbr.rel (0) target = $region13
    $region12: #{tpu_custom_call.1} parent=1 // pred_region
      %39 = dma.done [#allocation3], 128
    $region13: #{tpu_custom_call.1} parent=1 // pred_fallthru
      _
    // Predicated region
    $region14: #{tpu_custom_call.1} parent=1 // pred_check
      _
    $region15: #{tpu_custom_call.1} parent=1 // pred_check_branch
      %41 = sbr.rel (0) target = $region17
    $region16: #{tpu_custom_call.1} parent=1 // pred_region
      %43 = dma.done [#allocation6], 64
    $region17: #{tpu_custom_call.1} parent=1 // pred_fallthru
      _
    %v45 = vld [vmem:[#allocation2] sm:$0xff]
    %47 = vrot.lane.b32.xlu0 %v45, 112
    %v48 = vpop.permute.xlu0 %47
    %50 = vrot.lane.b32.xlu0 %v45, 96
    %v51 = vpop.permute.xlu0 %50
    %53 = vrot.lane.b32.xlu0 %v45, 80
    %v54 = vpop.permute.xlu0 %53
    %v56 = vrot.slane %v51, 4
    %vm57 = vcmask 1047556
    %v58 = vsel %vm57, %v56, %v45
    %v59 = vrot.slane %v45, 4
    %v60 = vsel %vm57, %v51, %v59
    %v62 = vunpack.c.l.s4 1983009808
    %v63 = vunpack.c.0.s8 %v62
    %v64 = vperm.slane %v58, %v63
    %v66 = vunpack.c.l.s4 1983009808
    %v67 = vunpack.c.0.s8 %v66
    %v68 = vperm.slane %v60, %v67
    %v69 = vrot.slane %v54, 4
    %v70 = vsel %vm57, %v69, %v48
    %v71 = vrot.slane %v48, 4
    %v72 = vsel %vm57, %v54, %v71
    %v74 = vunpack.c.l.s4 1983009808
    %v75 = vunpack.c.0.s8 %v74
    %v76 = vperm.slane %v70, %v75
    %v78 = vunpack.c.l.s4 1983009808
    %v79 = vunpack.c.0.s8 %v78
    %v80 = vperm.slane %v72, %v79
    %v81 = vrot.slane %v76, 4
    %v82 = vsel %vm57, %v81, %v64
    %v83 = vrot.slane %v64, 4
    %v84 = vsel %vm57, %v76, %v83
    %v86 = vunpack.c.l.s4 1934713408
    %v87 = vunpack.c.0.s8 %v86
    %v88 = vperm.slane %v82, %v87
    %v90 = vunpack.c.l.s4 1934713408
    %v91 = vunpack.c.0.s8 %v90
    %v92 = vperm.slane %v84, %v91
    %v93 = vrot.slane %v80, 4
    %v94 = vsel %vm57, %v93, %v68
    %v95 = vrot.slane %v68, 4
    %v96 = vsel %vm57, %v80, %v95
    %v98 = vunpack.c.l.s4 1934713408
    %v99 = vunpack.c.0.s8 %v98
    %v100 = vperm.slane %v94, %v99
    %v102 = vunpack.c.l.s4 1934713408
    %v103 = vunpack.c.0.s8 %v102
    %v104 = vperm.slane %v96, %v103
    %v105 = vrot.slane %v88, 4
    %v106 = vsel %vm57, 0.0, %v105
    %v107 = vrot.slane %v92, 4
    %v108 = vsel %vm57, 0.0, %v107
    %v109 = vrot.slane %v100, 4
    %v110 = vsel %vm57, 0.0, %v109
    %v111 = vrot.slane %v104, 4
    %v112 = vsel %vm57, 0.0, %v111
    %v113 = vsel %vm57, %v107, %v88
    %v115 = vunpack.c.l.s4 1983009808
    %v116 = vunpack.c.0.s8 %v115
    %v117 = vperm.slane %v113, %v116
    %v118 = vrot.slane %v108, 4
    %v119 = vsel %vm57, %v118, %v106
    %v121 = vunpack.c.l.s4 1983009808
    %v122 = vunpack.c.0.s8 %v121
    %v123 = vperm.slane %v119, %v122
    %v124 = vsel %vm57, %v111, %v100
    %v126 = vunpack.c.l.s4 1983009808
    %v127 = vunpack.c.0.s8 %v126
    %v128 = vperm.slane %v124, %v127
    %v129 = vrot.slane %v112, 4
    %v130 = vsel %vm57, %v129, %v110
    %v132 = vunpack.c.l.s4 1983009808
    %v133 = vunpack.c.0.s8 %v132
    %v134 = vperm.slane %v130, %v133
    %v135 = vrot.slane %v123, 4
    %v136 = vsel %vm57, %v135, %v117
    %v137 = vrot.slane %v117, 4
    %v138 = vsel %vm57, %v123, %v137
    %v140 = vunpack.c.l.s4 1934713408
    %v141 = vunpack.c.0.s8 %v140
    %v142 = vperm.slane %v136, %v141
    %v144 = vunpack.c.l.s4 1934713408
    %v145 = vunpack.c.0.s8 %v144
    %v146 = vperm.slane %v138, %v145
    %v147 = vrot.slane %v134, 4
    %v148 = vsel %vm57, %v147, %v128
    %v149 = vrot.slane %v128, 4
    %v150 = vsel %vm57, %v134, %v149
    %v152 = vunpack.c.l.s4 1934713408
    %v153 = vunpack.c.0.s8 %v152
    %v154 = vperm.slane %v148, %v153
    %v156 = vunpack.c.l.s4 1934713408
    %v157 = vunpack.c.0.s8 %v156
    %v158 = vperm.slane %v150, %v157
    %v159 = vrot.slane %v154, 4
    %v160 = vsel %vm57, %v159, %v142
    %v161 = vrot.slane %v142, 4
    %v162 = vsel %vm57, %v154, %v161
    %v163 = vrot.slane %v158, 4
    %v164 = vsel %vm57, %v163, %v146
    %v165 = vrot.slane %v146, 4
    %v166 = vsel %vm57, %v158, %v165
    %vm167 = vcmask 130048
    %168 = vst.msk [vmem:[#allocation7] sm:$0xff] %vm167, %v160
    %169 = vst.msk [vmem:[#allocation7 + $0x8] sm:$0xff] %vm167, %v162
    %170 = vst.msk [vmem:[#allocation7 + $0x10] sm:$0xff] %vm167, %v164
    %171 = vst.msk [vmem:[#allocation7 + $0x18] sm:$0xff] %vm167, %v166
    %v172 = vld [vmem:[#allocation5] sm:$0xf]
    %174 = vrot.lane.b32.xlu0 %v172, 112
    %v175 = vpop.permute.xlu0 %174
    %176 = vrot.lane.b32.xlu0 %v172, 96
    %v177 = vpop.permute.xlu0 %176
    %178 = vrot.lane.b32.xlu0 %v172, 80
    %v179 = vpop.permute.xlu0 %178
    %v182 = vpack.i.b16 %v175, %v172
    %v183 = vshrl.u32 %v172, 16
    %v184 = vshrl.u32 %v175, 16
    %v185 = vpack.i.b16 %v184, %v183
    %v188 = vpack.i.b16 %v179, %v177
    %v189 = vshrl.u32 %v177, 16
    %v190 = vshrl.u32 %v179, 16
    %v191 = vpack.i.b16 %v190, %v189
    %v194 = vunpack.c.l.s4 1983009808
    %v195 = vunpack.c.0.s8 %v194
    %v196 = vperm.slane %v182, %v195
    %v199 = vunpack.c.l.s4 1983009808
    %v200 = vunpack.c.0.s8 %v199
    %v201 = vperm.slane %v188, %v200
    %v202 = vrot.slane %v201, 4
    %vm203 = vcmask 1047556
    %v204 = vsel %vm203, %v202, %v196
    %v205 = vrot.slane %v196, 4
    %v206 = vsel %vm203, %v201, %v205
    %v208 = vunpack.c.l.s4 1934713408
    %v209 = vunpack.c.0.s8 %v208
    %v210 = vperm.slane %v204, %v209
    %v212 = vunpack.c.l.s4 1934713408
    %v213 = vunpack.c.0.s8 %v212
    %v214 = vperm.slane %v206, %v213
    %v215 = vrot.slane %v210, 4
    %v216 = vsel %vm203, 0, %v215
    %v217 = vrot.slane %v214, 4
    %v218 = vsel %vm203, 0, %v217
    %v221 = vunpack.c.l.s4 1983009808
    %v222 = vunpack.c.0.s8 %v221
    %v223 = vperm.slane %v185, %v222
    %v226 = vunpack.c.l.s4 1983009808
    %v227 = vunpack.c.0.s8 %v226
    %v228 = vperm.slane %v191, %v227
    %v229 = vrot.slane %v228, 4
    %v230 = vsel %vm203, %v229, %v223
    %v231 = vrot.slane %v223, 4
    %v232 = vsel %vm203, %v228, %v231
    %v234 = vunpack.c.l.s4 1934713408
    %v235 = vunpack.c.0.s8 %v234
    %v236 = vperm.slane %v230, %v235
    %v238 = vunpack.c.l.s4 1934713408
    %v239 = vunpack.c.0.s8 %v238
    %v240 = vperm.slane %v232, %v239
    %v241 = vrot.slane %v236, 4
    %v242 = vsel %vm203, 0, %v241
    %v243 = vrot.slane %v240, 4
    %v244 = vsel %vm203, 0, %v243
    %v245 = vsel %vm203, %v217, %v210
    %v247 = vunpack.c.l.s4 1983009808
    %v248 = vunpack.c.0.s8 %v247
    %v249 = vperm.slane %v245, %v248
    %v250 = vrot.slane %v218, 4
    %v251 = vsel %vm203, %v250, %v216
    %v253 = vunpack.c.l.s4 1983009808
    %v254 = vunpack.c.0.s8 %v253
    %v255 = vperm.slane %v251, %v254
    %v256 = vrot.slane %v255, 4
    %v257 = vsel %vm203, %v256, %v249
    %v259 = vunpack.c.l.s4 1934713408
    %v260 = vunpack.c.0.s8 %v259
    %v261 = vperm.slane %v257, %v260
    %v262 = vrot.slane %v261, 4
    %v263 = vsel %vm203, 0, %v262
    %v264 = vsel %vm203, %v243, %v236
    %v266 = vunpack.c.l.s4 1983009808
    %v267 = vunpack.c.0.s8 %v266
    %v268 = vperm.slane %v264, %v267
    %v269 = vrot.slane %v244, 4
    %v270 = vsel %vm203, %v269, %v242
    %v272 = vunpack.c.l.s4 1983009808
    %v273 = vunpack.c.0.s8 %v272
    %v274 = vperm.slane %v270, %v273
    %v275 = vrot.slane %v274, 4
    %v276 = vsel %vm203, %v275, %v268
    %v278 = vunpack.c.l.s4 1934713408
    %v279 = vunpack.c.0.s8 %v278
    %v280 = vperm.slane %v276, %v279
    %v281 = vrot.slane %v280, 4
    %v282 = vsel %vm203, 0, %v281
    %v285 = vpack.i.b16 %v280, %v261
    %v287 = vshrl.u32 %v261, 16
    %v288 = vshrl.u32 %v280, 16
    %v289 = vpack.i.b16 %v288, %v287
    %v293 = vpack.i.b16 %v282, %v263
    %v295 = vshrl.u32 %v263, 16
    %v296 = vshrl.u32 %v282, 16
    %v297 = vpack.i.b16 %v296, %v295
    %vm299 = vcmask 125952
    %300 = vst.msk [vmem:[#allocation8] sm:$0xf] %vm299, %v285
    %301 = vst.msk [vmem:[#allocation8 + $0x4] sm:$0xf] %vm299, %v289
    %302 = vst.msk [vmem:[#allocation8 + $0x8] sm:$0xf] %vm299, %v293
    %303 = vst.msk [vmem:[#allocation8 + $0xc] sm:$0xf] %vm299, %v297
    %v304 = vld [vmem:[#allocation5] sm:$0xf]
    %306 = vrot.lane.b32.xlu0 %v304, 112
    %v307 = vpop.permute.xlu0 %306
    %308 = vrot.lane.b32.xlu0 %v304, 96
    %v309 = vpop.permute.xlu0 %308
    %310 = vrot.lane.b32.xlu0 %v304, 80
    %v311 = vpop.permute.xlu0 %310
    %v314 = vpack.i.b16 %v307, %v304
    %v315 = vshrl.u32 %v304, 16
    %v316 = vshrl.u32 %v307, 16
    %v317 = vpack.i.b16 %v316, %v315
    %v320 = vpack.i.b16 %v311, %v309
    %v321 = vshrl.u32 %v309, 16
    %v322 = vshrl.u32 %v311, 16
    %v323 = vpack.i.b16 %v322, %v321
    %v326 = vunpack.c.l.s4 1983009808
    %v327 = vunpack.c.0.s8 %v326
    %v328 = vperm.slane %v314, %v327
    %v331 = vunpack.c.l.s4 1983009808
    %v332 = vunpack.c.0.s8 %v331
    %v333 = vperm.slane %v320, %v332
    %v334 = vrot.slane %v333, 4
    %v335 = vsel %vm203, %v334, %v328
    %v336 = vrot.slane %v328, 4
    %v337 = vsel %vm203, %v333, %v336
    %v339 = vunpack.c.l.s4 1934713408
    %v340 = vunpack.c.0.s8 %v339
    %v341 = vperm.slane %v335, %v340
    %v343 = vunpack.c.l.s4 1934713408
    %v344 = vunpack.c.0.s8 %v343
    %v345 = vperm.slane %v337, %v344
    %v346 = vrot.slane %v341, 4
    %v347 = vsel %vm203, 0, %v346
    %v348 = vrot.slane %v345, 4
    %v349 = vsel %vm203, 0, %v348
    %v352 = vunpack.c.l.s4 1983009808
    %v353 = vunpack.c.0.s8 %v352
    %v354 = vperm.slane %v317, %v353
    %v357 = vunpack.c.l.s4 1983009808
    %v358 = vunpack.c.0.s8 %v357
    %v359 = vperm.slane %v323, %v358
    %v360 = vrot.slane %v359, 4
    %v361 = vsel %vm203, %v360, %v354
    %v362 = vrot.slane %v354, 4
    %v363 = vsel %vm203, %v359, %v362
    %v365 = vunpack.c.l.s4 1934713408
    %v366 = vunpack.c.0.s8 %v365
    %v367 = vperm.slane %v361, %v366
    %v369 = vunpack.c.l.s4 1934713408
    %v370 = vunpack.c.0.s8 %v369
    %v371 = vperm.slane %v363, %v370
    %v372 = vrot.slane %v367, 4
    %v373 = vsel %vm203, 0, %v372
    %v374 = vrot.slane %v371, 4
    %v375 = vsel %vm203, 0, %v374
    %v376 = vsel %vm203, %v348, %v341
    %v378 = vunpack.c.l.s4 1983009808
    %v379 = vunpack.c.0.s8 %v378
    %v380 = vperm.slane %v376, %v379
    %v381 = vrot.slane %v349, 4
    %v382 = vsel %vm203, %v381, %v347
    %v384 = vunpack.c.l.s4 1983009808
    %v385 = vunpack.c.0.s8 %v384
    %v386 = vperm.slane %v382, %v385
    %v387 = vrot.slane %v386, 4
    %v388 = vsel %vm203, %v387, %v380
    %v390 = vunpack.c.l.s4 1934713408
    %v391 = vunpack.c.0.s8 %v390
    %v392 = vperm.slane %v388, %v391
    %v393 = vrot.slane %v392, 4
    %v394 = vsel %vm203, 0, %v393
    %v395 = vsel %vm203, %v374, %v367
    %v397 = vunpack.c.l.s4 1983009808
    %v398 = vunpack.c.0.s8 %v397
    %v399 = vperm.slane %v395, %v398
    %v400 = vrot.slane %v375, 4
    %v401 = vsel %vm203, %v400, %v373
    %v403 = vunpack.c.l.s4 1983009808
    %v404 = vunpack.c.0.s8 %v403
    %v405 = vperm.slane %v401, %v404
    %v406 = vrot.slane %v405, 4
    %v407 = vsel %vm203, %v406, %v399
    %v409 = vunpack.c.l.s4 1934713408
    %v410 = vunpack.c.0.s8 %v409
    %v411 = vperm.slane %v407, %v410
    %v412 = vrot.slane %v411, 4
    %v413 = vsel %vm203, 0, %v412
    %v416 = vpack.i.b16 %v411, %v392
    %v417 = vshrl.u32 %v392, 16
    %v418 = vshrl.u32 %v411, 16
    %v419 = vpack.i.b16 %v418, %v417
    %v422 = vpack.i.b16 %v413, %v394
    %v423 = vshrl.u32 %v394, 16
    %v424 = vshrl.u32 %v413, 16
    %v425 = vpack.i.b16 %v424, %v423
    %v428 = vpack.i.b16 %v419, %v416
    %v429 = vshrl.u32 %v416, 16
    %v430 = vshrl.u32 %v419, 16
    %v431 = vpack.i.b16 %v430, %v429
    %v434 = vpack.i.b16 %v425, %v422
    %v435 = vshrl.u32 %v422, 16
    %v436 = vshrl.u32 %v425, 16
    %v437 = vpack.i.b16 %v436, %v435
    %v440 = vunpack.c.l.s4 1983009808
    %v441 = vunpack.c.0.s8 %v440
    %v442 = vperm.slane %v428, %v441
    %v445 = vunpack.c.l.s4 1983009808
    %v446 = vunpack.c.0.s8 %v445
    %v447 = vperm.slane %v434, %v446
    %v448 = vrot.slane %v447, 4
    %v449 = vsel %vm203, %v448, %v442
    %v450 = vrot.slane %v442, 4
    %v451 = vsel %vm203, %v447, %v450
    %v453 = vunpack.c.l.s4 1934713408
    %v454 = vunpack.c.0.s8 %v453
    %v455 = vperm.slane %v449, %v454
    %v457 = vunpack.c.l.s4 1934713408
    %v458 = vunpack.c.0.s8 %v457
    %v459 = vperm.slane %v451, %v458
    %v460 = vrot.slane %v455, 4
    %v461 = vsel %vm203, 0, %v460
    %v462 = vrot.slane %v459, 4
    %v463 = vsel %vm203, 0, %v462
    %v466 = vunpack.c.l.s4 1983009808
    %v467 = vunpack.c.0.s8 %v466
    %v468 = vperm.slane %v431, %v467
    %v471 = vunpack.c.l.s4 1983009808
    %v472 = vunpack.c.0.s8 %v471
    %v473 = vperm.slane %v437, %v472
    %v474 = vrot.slane %v473, 4
    %v475 = vsel %vm203, %v474, %v468
    %v476 = vrot.slane %v468, 4
    %v477 = vsel %vm203, %v473, %v476
    %v479 = vunpack.c.l.s4 1934713408
    %v480 = vunpack.c.0.s8 %v479
    %v481 = vperm.slane %v475, %v480
    %v483 = vunpack.c.l.s4 1934713408
    %v484 = vunpack.c.0.s8 %v483
    %v485 = vperm.slane %v477, %v484
    %v486 = vrot.slane %v481, 4
    %v487 = vsel %vm203, 0, %v486
    %v488 = vrot.slane %v485, 4
    %v489 = vsel %vm203, 0, %v488
    %v490 = vsel %vm203, %v462, %v455
    %v492 = vunpack.c.l.s4 1983009808
    %v493 = vunpack.c.0.s8 %v492
    %v494 = vperm.slane %v490, %v493
    %v495 = vrot.slane %v463, 4
    %v496 = vsel %vm203, %v495, %v461
    %v498 = vunpack.c.l.s4 1983009808
    %v499 = vunpack.c.0.s8 %v498
    %v500 = vperm.slane %v496, %v499
    %v501 = vrot.slane %v500, 4
    %v502 = vsel %vm203, %v501, %v494
    %v504 = vunpack.c.l.s4 1934713408
    %v505 = vunpack.c.0.s8 %v504
    %v506 = vperm.slane %v502, %v505
    %v507 = vrot.slane %v506, 4
    %v508 = vsel %vm203, 0, %v507
    %v509 = vsel %vm203, %v488, %v481
    %v511 = vunpack.c.l.s4 1983009808
    %v512 = vunpack.c.0.s8 %v511
    %v513 = vperm.slane %v509, %v512
    %v514 = vrot.slane %v489, 4
    %v515 = vsel %vm203, %v514, %v487
    %v517 = vunpack.c.l.s4 1983009808
    %v518 = vunpack.c.0.s8 %v517
    %v519 = vperm.slane %v515, %v518
    %v520 = vrot.slane %v519, 4
    %v521 = vsel %vm203, %v520, %v513
    %v523 = vunpack.c.l.s4 1934713408
    %v524 = vunpack.c.0.s8 %v523
    %v525 = vperm.slane %v521, %v524
    %v526 = vrot.slane %v525, 4
    %v527 = vsel %vm203, 0, %v526
    %v530 = vpack.i.b16 %v525, %v506
    %v531 = vshrl.u32 %v506, 16
    %v532 = vshrl.u32 %v525, 16
    %v533 = vpack.i.b16 %v532, %v531
    %v536 = vpack.i.b16 %v527, %v508
    %v537 = vshrl.u32 %v508, 16
    %v538 = vshrl.u32 %v527, 16
    %v539 = vpack.i.b16 %v538, %v537
    %v540 = vunpack.c.l.b16 %v533
    %v541 = vpack.c.b16 %v540, %v540
    %542 = vrot.lane.b32.xlu0 %v541, 16
    %v543 = vpop.permute.xlu0 %542
    %v544 = vunpack.c.l.b16 %v536
    %v545 = vpack.c.b16 %v544, %v544
    %546 = vrot.lane.b32.xlu0 %v545, 32
    %v547 = vpop.permute.xlu0 %546
    %v548 = vunpack.c.l.b16 %v539
    %v549 = vpack.c.b16 %v548, %v548
    %550 = vrot.lane.b32.xlu0 %v549, 48
    %v551 = vpop.permute.xlu0 %550
    %v554 = vsel %vm167, %v530, %v543
    %vm555 = vcmask 261120
    %v557 = vsel %vm555, %v554, %v547
    %vm558 = vcmask 392192
    %v560 = vsel %vm558, %v557, %v551
    %vm562 = vcmask 519168
    %563 = vst.msk [vmem:[#allocation10] sm:$0xf] %vm562, %v560
    // Predicated region
    $region18: #{tpu_custom_call.1} parent=1 // pred_check
      _
    $region19: #{tpu_custom_call.1} parent=1 // pred_check_branch
      %565 = sbr.rel (0) target = $region21
    $region20: #{tpu_custom_call.1} parent=1 // pred_region
      %567 = vsyncadd [#allocation4], 0
      %s568 = sshll.u32 [#allocation7], 4
      %s569 = int_to_ptr.vmem [resolvable:$true] %s568
      %s570 = sshll.u32 %s2, 4
      %s571 = int_to_ptr.hbm [resolvable:$true] %s570
      %576 = dma.vmem_to_hbm [thread:$0]  %s569, 512, %s571, [#allocation4], 128, 128, 8
    $region21: #{tpu_custom_call.1} parent=1 // pred_fallthru
      _
    // Predicated region
    $region22: #{tpu_custom_call.1} parent=1 // pred_check
      _
    $region23: #{tpu_custom_call.1} parent=1 // pred_check_branch
      %578 = sbr.rel (0) target = $region25
    $region24: #{tpu_custom_call.1} parent=1 // pred_region
      %580 = vsyncadd [#allocation9], 0
      %s581 = sshll.u32 [#allocation8], 4
      %s582 = int_to_ptr.vmem [resolvable:$true] %s581
      %s583 = sshll.u32 %s3, 4
      %s584 = int_to_ptr.hbm [resolvable:$true] %s583
      %589 = dma.vmem_to_hbm [thread:$0]  %s582, 256, %s584, [#allocation9], 64, 64, 4
    $region25: #{tpu_custom_call.1} parent=1 // pred_fallthru
      _
    // Predicated region
    $region26: #{tpu_custom_call.1} parent=1 // pred_check
      _
    $region27: #{tpu_custom_call.1} parent=1 // pred_check_branch
      %591 = sbr.rel (0) target = $region29
    $region28: #{tpu_custom_call.1} parent=1 // pred_region
      %593 = vsyncadd [#allocation9], 0
      %s595 = sshll.u32 [#allocation10], 4
      %s596 = int_to_ptr.vmem [resolvable:$true] %s595
      %s597 = sshll.u32 %s4, 4
      %s598 = int_to_ptr.hbm [resolvable:$true] %s597
      %600 = dma.vmem_to_hbm [thread:$0]  %s596, 64, %s598, [#allocation9]
    $region29: #{tpu_custom_call.1} parent=1 // pred_fallthru
      _
    // Predicated region
    $region30: #{tpu_custom_call.1} parent=1 // pred_check
      _
    $region31: #{tpu_custom_call.1} parent=1 // pred_check_branch
      %602 = sbr.rel (0) target = $region33
    $region32: #{tpu_custom_call.1} parent=1 // pred_region
      %604 = dma.done [#allocation4], 512
    $region33: #{tpu_custom_call.1} parent=1 // pred_fallthru
      _
    // Predicated region
    $region34: #{tpu_custom_call.1} parent=1 // pred_check
      _
    $region35: #{tpu_custom_call.1} parent=1 // pred_check_branch
      %606 = sbr.rel (0) target = $region37
    $region36: #{tpu_custom_call.1} parent=1 // pred_region
      %608 = dma.done [#allocation9], 256
    $region37: #{tpu_custom_call.1} parent=1 // pred_fallthru
      _
    // Predicated region
    $region38: #{tpu_custom_call.1} parent=1 // pred_check
      _
    $region39: #{tpu_custom_call.1} parent=1 // pred_check_branch
      %610 = sbr.rel (0) target = $region41
    $region40: #{tpu_custom_call.1} parent=1 // pred_region
      %612 = dma.done [#allocation9], 64
    $region41: #{tpu_custom_call.1} parent=1 // pred_fallthru
      _
    %613 = vsyncpa [#allocation3], 1
    %614 = vsyncpa [#allocation6], 1
    %615 = vsyncpa [#allocation4], 1
    %616 = vsyncpa [#allocation9], 1

// kernel: tpu_custom_call.1
$region0: #{tpu_custom_call.1}
  #allocation0 [shape = 'u32[]', space=smem, size = 0x4, offset = 0x4, fixed_abs, tag = 'smem constant byte address 0x4 - core index']
  #allocation1 [shape = 'u32[72,128]{1,0:T(1,128)}', space=vmem, size = 0x9000, scoped, tag = 'internal scratch']
  %s0 = inlined_call_operand.hbm [shape: f32[16,128], index: 0, kind: input, shape index: {}]
  %s1 = inlined_call_operand.hbm [shape: f32[8,128], index: 1, kind: input, shape index: {}]
  %s2 = inlined_call_operand.hbm [shape: f32[16,128], index: 2, kind: output, shape index: {}]
  %s3 = sld [smem:[#allocation0]]
  $region49: #{tpu_custom_call.1} parent=0
    _
  %s5 = ssub.s32 1, %s3
  %s6 = scalar_select 0, %s5, %s3
  $region1: #{tpu_custom_call.1} parent=0
    #allocation2 [shape = 'u8[8192]{0}', space=vmem, size = 0x2000, scoped, tag = 'input window, operand 0']
    #allocation3 [shape = 's32[2]{0}', space=sflag, size = 0x8, scoped, tag = 'scoped memory for tpu_custom_call.1']
    #allocation4 [shape = 's32[2]{0}', space=sflag, size = 0x8, scoped, tag = 'scoped memory for tpu_custom_call.1']
    #allocation5 [shape = 'u8[4096]{0}', space=vmem, size = 0x1000, scoped, tag = 'input window, operand 1, single buffered']
    #allocation6 [shape = 's32[1]{0}', space=sflag, size = 0x4, scoped, tag = 'scoped memory for tpu_custom_call.1']
    #allocation7 [shape = 'u8[8192]{0}', space=vmem, size = 0x2000, scoped, tag = 'output window, operand 0']
    %7 = vsyncpa [#allocation3], 0
    %s8 = scalar_lea.sflag [#allocation3], 1
    %9 = vsyncpa %s8, 0
    %10 = vsyncpa [#allocation6], 0
    %11 = vsyncpa [#allocation4], 0
    %s12 = scalar_lea.sflag [#allocation4], 1
    %13 = vsyncpa %s12, 0
    loop: start=0, step=1, limit=4
    $region2: #{tpu_custom_call.1} parent=1 // loop_pre_header
      _
    $region3: #{tpu_custom_call.1} parent=1 // loop_header
      %s15 = sphi 0, %s19
      %p16 = scmp.ge.s32.totalorder %s15, 4
      %s25 = sphi 0, %s27
      %s28 = sphi 0, %s25
      %s29 = sphi 0, %s28
      %s45 = sphi 0, %s29
      %s49 = sphi 0, %s49
      %s51 = sphi 0, %s49
      %s52 = sphi 0, %s51
      %s66 = sphi 0, %s52
      %s72 = sphi 0, %s74
      %s75 = sphi 0, %s72
      %s76 = sphi 0, %s75
      %s92 = sphi 0, %s76
    $region4: #{tpu_custom_call.1} parent=1 // loop_header_branch
      %18 = sbr.rel (%p16) target = $region8
    $region5: #{tpu_custom_call.1} parent=1 // loop_body
      %s20 = ssub.s32 %s15, 1
      %s21 = ssub.s32 %s15, 2
      %s22 = sadd.s32 %s15, 1
      %s23 = ssub.s32 %s15, %s22
      %p24 = scmp.eq.s32.totalorder %s23, 0
      %s26 = sadd.s32 %s25, 1
      %s27 = scalar_select %p24, %s25, %s26
      %p30 = pneg %p24
      %p31 = scmp.eq.s32.totalorder %s15, 1
      %p32 = por %p30, %p31
      %p33 = scmp.ne.s32.totalorder %s25, %s28
      %p34 = scmp.eq.s32.totalorder %s15, 0
      %p35 = por %p33, %p34
      %p36 = scmp.ne.s32.totalorder %s25, %s28
      %p37 = scmp.eq.s32.totalorder %s20, 1
      %p38 = por %p36, %p37
      %p39 = scmp.ne.s32.totalorder %s28, %s29
      %p40 = scmp.eq.s32.totalorder %s20, 0
      %p41 = por %p39, %p40
      %p42 = scmp.ne.s32.totalorder %s28, %s29
      %p43 = scmp.eq.s32.totalorder %s21, 1
      %p44 = por %p42, %p43
      %p46 = scmp.ne.s32.totalorder %s29, %s45
      %p47 = scmp.eq.s32.totalorder %s21, 0
      %p48 = por %p46, %p47
      %s50 = sadd.s32 %s49, 1
      %p53 = scmp.eq.s32.totalorder %s15, 1
      %p54 = scmp.ne.s32.totalorder %s49, %s51
      %p55 = scmp.eq.s32.totalorder %s15, 0
      %p56 = por %p54, %p55
      %p57 = scmp.ne.s32.totalorder %s49, %s51
      %p58 = scmp.eq.s32.totalorder %s20, 1
      %p59 = por %p57, %p58
      %p60 = scmp.ne.s32.totalorder %s51, %s52
      %p61 = scmp.eq.s32.totalorder %s20, 0
      %p62 = por %p60, %p61
      %p63 = scmp.ne.s32.totalorder %s51, %s52
      %p64 = scmp.eq.s32.totalorder %s21, 1
      %p65 = por %p63, %p64
      %p67 = scmp.ne.s32.totalorder %s52, %s66
      %p68 = scmp.eq.s32.totalorder %s21, 0
      %p69 = por %p67, %p68
      %s70 = ssub.s32 %s15, %s22
      %p71 = scmp.eq.s32.totalorder %s70, 0
      %s73 = sadd.s32 %s72, 1
      %s74 = scalar_select %p71, %s72, %s73
      %p77 = pneg %p71
      %p78 = scmp.eq.s32.totalorder %s15, 1
      %p79 = por %p77, %p78
      %p80 = scmp.ne.s32.totalorder %s72, %s75
      %p81 = scmp.eq.s32.totalorder %s15, 0
      %p82 = por %p80, %p81
      %p83 = scmp.ne.s32.totalorder %s72, %s75
      %p84 = scmp.eq.s32.totalorder %s20, 1
      %p85 = por %p83, %p84
      %p86 = scmp.ne.s32.totalorder %s75, %s76
      %p87 = scmp.eq.s32.totalorder %s20, 0
      %p88 = por %p86, %p87
      %p89 = scmp.ne.s32.totalorder %s75, %s76
      %p90 = scmp.eq.s32.totalorder %s21, 1
      %p91 = por %p89, %p90
      %p93 = scmp.ne.s32.totalorder %s76, %s92
      %p94 = scmp.eq.s32.totalorder %s21, 0
      %p95 = por %p93, %p94
      %p96 = scmp.le.s32.totalorder 1, %s15
      %p97 = scmp.lt.s32.totalorder %s15, 3
      %p98 = pnand %p96, %p97
      %p99 = pneg %p98
      // Predicated region
      $region9: #{tpu_custom_call.1} parent=5 // pred_check
        _
      $region10: #{tpu_custom_call.1} parent=5 // pred_check_branch
        %101 = sbr.rel (%p98) target = $region12
      $region11: #{tpu_custom_call.1} parent=5 // pred_region
        %s102 = ssub.s32 %s15, 1
        // Predicated region
        $region13: #{tpu_custom_call.1} parent=11 // pred_check
          %p103 = pneg %p62
        $region14: #{tpu_custom_call.1} parent=11 // pred_check_branch
          %105 = sbr.rel (%p103) target = $region16
        $region15: #{tpu_custom_call.1} parent=11 // pred_region
          %107 = vsyncadd [#allocation6], 0
          %s109 = sshll.u32 %s1, 4
          %s110 = int_to_ptr.hbm [resolvable:$true] %s109
          %s111 = sshll.u32 [#allocation5], 4
          %s112 = int_to_ptr.vmem [resolvable:$true] %s111
          %114 = dma.hbm_to_vmem [thread:$0]  %s110, 128, %s112, [#allocation6]
        $region16: #{tpu_custom_call.1} parent=11 // pred_fallthru
          _
      $region12: #{tpu_custom_call.1} parent=5 // pred_fallthru
        _
      %p115 = scmp.lt.s32.totalorder %s15, 2
      // Predicated region
      $region17: #{tpu_custom_call.1} parent=5 // pred_check
        %p116 = pneg %p115
      $region18: #{tpu_custom_call.1} parent=5 // pred_check_branch
        %118 = sbr.rel (%p116) target = $region20
      $region19: #{tpu_custom_call.1} parent=5 // pred_region
        // Predicated region
        $region21: #{tpu_custom_call.1} parent=19 // pred_check
          %p119 = pneg %p35
        $region22: #{tpu_custom_call.1} parent=19 // pred_check_branch
          %121 = sbr.rel (%p119) target = $region24
        $region23: #{tpu_custom_call.1} parent=19 // pred_region
          %s122 = sand.u32 %s25, 1
          %s123 = scalar_lea.sflag [#allocation3], %s122
          %s124 = sand.u32 %s25, 1
          %s125 = smul.addr %s124, 8
          %s126 = scalar_lea.vmem [#allocation2], %s125
          %128 = vsyncadd %s123, 0
          %s129 = smul.addr %s15, 8
          %s130 = scalar_lea.hbm %s0, %s129
          %s132 = sshll.u32 %s130, 4
          %s133 = int_to_ptr.hbm [resolvable:$true] %s132
          %s134 = sshll.u32 %s126, 4
          %s135 = int_to_ptr.vmem [resolvable:$true] %s134
          %137 = dma.hbm_to_vmem [thread:$0]  %s133, 128, %s135, %s123
        $region24: #{tpu_custom_call.1} parent=19 // pred_fallthru
          _
      $region20: #{tpu_custom_call.1} parent=5 // pred_fallthru
        _
      %p138 = scmp.le.s32.totalorder 1, %s15
      %p139 = scmp.lt.s32.totalorder %s15, 3
      %p140 = pnand %p138, %p139
      %p141 = pneg %p140
      // Predicated region
      $region25: #{tpu_custom_call.1} parent=5 // pred_check
        _
      $region26: #{tpu_custom_call.1} parent=5 // pred_check_branch
        %143 = sbr.rel (%p140) target = $region28
      $region27: #{tpu_custom_call.1} parent=5 // pred_region
        %s144 = ssub.s32 %s15, 1
        %s145 = sand.u32 %s28, 1
        %s146 = scalar_lea.sflag [#allocation3], %s145
        %s147 = sand.u32 %s28, 1
        %s148 = smul.addr %s147, 8
        %s149 = scalar_lea.vmem [#allocation2], %s148
        // Predicated region
        $region29: #{tpu_custom_call.1} parent=27 // pred_check
          %p150 = pneg %p41
        $region30: #{tpu_custom_call.1} parent=27 // pred_check_branch
          %152 = sbr.rel (%p150) target = $region32
        $region31: #{tpu_custom_call.1} parent=27 // pred_region
          %154 = dma.done %s146, 128
        $region32: #{tpu_custom_call.1} parent=27 // pred_fallthru
          _
        // Predicated region
        $region33: #{tpu_custom_call.1} parent=27 // pred_check
          %p155 = pneg %p62
        $region34: #{tpu_custom_call.1} parent=27 // pred_check_branch
          %157 = sbr.rel (%p155) target = $region36
        $region35: #{tpu_custom_call.1} parent=27 // pred_region
          %159 = dma.done [#allocation6], 128
        $region36: #{tpu_custom_call.1} parent=27 // pred_fallthru
          _
        %s160 = sand.u32 %s28, 1
        %s161 = scalar_lea.sflag [#allocation3], %s160
        %s162 = sand.u32 %s28, 1
        %s163 = smul.addr %s162, 8
        %s164 = scalar_lea.vmem [#allocation2], %s163
        %p165 = pneg %p41
        %p166 = pneg %p38
        %p167 = pneg %p62
        %p168 = pneg %p59
        %p169 = pneg %p88
        %p170 = pneg %p85
        %s171 = sand.u32 %s75, 1
        %s172 = scalar_lea.sflag [#allocation4], %s171
        %s173 = sand.u32 %s75, 1
        %s174 = smul.addr %s173, 8
        %s175 = scalar_lea.vmem [#allocation7], %s174
        %v176 = vld [vmem:[%s149] sm:$0xff]
        %v177 = vld [vmem:[#allocation5] sm:$0xff]
        %v178 = vadd.f32 %v176, %v177
        %179 = vst [vmem:[%s175] sm:$0xff] %v178
        %s180 = sand.u32 %s75, 1
        %s181 = scalar_lea.sflag [#allocation4], %s180
        %s182 = sand.u32 %s75, 1
        %s183 = smul.addr %s182, 8
        %s184 = scalar_lea.vmem [#allocation7], %s183
        // Predicated region
        $region37: #{tpu_custom_call.1} parent=27 // pred_check
          %p185 = pneg %p85
        $region38: #{tpu_custom_call.1} parent=27 // pred_check_branch
          %187 = sbr.rel (%p185) target = $region40
        $region39: #{tpu_custom_call.1} parent=27 // pred_region
          %189 = vsyncadd %s181, 0
          %s190 = smul.addr %s20, 8
          %s191 = scalar_lea.hbm %s2, %s190
          %s193 = sshll.u32 %s184, 4
          %s194 = int_to_ptr.vmem [resolvable:$true] %s193
          %s195 = sshll.u32 %s191, 4
          %s196 = int_to_ptr.hbm [resolvable:$true] %s195
          %198 = dma.vmem_to_hbm [thread:$0]  %s194, 128, %s196, %s181
        $region40: #{tpu_custom_call.1} parent=27 // pred_fallthru
          _
      $region28: #{tpu_custom_call.1} parent=5 // pred_fallthru
        _
      %p199 = scmp.le.s32.totalorder 2, %s15
      // Predicated region
      $region41: #{tpu_custom_call.1} parent=5 // pred_check
        %p200 = pneg %p199
      $region42: #{tpu_custom_call.1} parent=5 // pred_check_branch
        %202 = sbr.rel (%p200) target = $region44
      $region43: #{tpu_custom_call.1} parent=5 // pred_region
        %s203 = ssub.s32 %s15, 2
        // Predicated region
        $region45: #{tpu_custom_call.1} parent=43 // pred_check
          %p204 = pneg %p91
        $region46: #{tpu_custom_call.1} parent=43 // pred_check_branch
          %206 = sbr.rel (%p204) target = $region48
        $region47: #{tpu_custom_call.1} parent=43 // pred_region
          %s207 = sand.u32 %s76, 1
          %s208 = scalar_lea.sflag [#allocation4], %s207
          %s209 = sand.u32 %s76, 1
          %s210 = smul.addr %s209, 8
          %s211 = scalar_lea.vmem [#allocation7], %s210
          %213 = dma.done %s208, 128
        $region48: #{tpu_custom_call.1} parent=43 // pred_fallthru
          _
      $region44: #{tpu_custom_call.1} parent=5 // pred_fallthru
        _
    $region6: #{tpu_custom_call.1} parent=1 // loop_footer
      %s19 = sadd.s32 1, %s15
    $region7: #{tpu_custom_call.1} parent=1 // loop_footer_branch
      %14 = sbr.rel target = $region3
    $region8: #{tpu_custom_call.1} parent=1 // loop_exit
      _
    %214 = vsyncpa [#allocation3], 1
    %s215 = scalar_lea.sflag [#allocation3], 1
    %216 = vsyncpa %s215, 1
    %217 = vsyncpa [#allocation6], 1
    %218 = vsyncpa [#allocation4], 1
    %s219 = scalar_lea.sflag [#allocation4], 1
    %220 = vsyncpa %s219, 1

// kernel: tpu_custom_call.1
$region0: #{tpu_custom_call.1}
  #allocation0 [shape = 'u32[]', space=smem, size = 0x4, offset = 0x4, fixed_abs, tag = 'smem constant byte address 0x4 - core index']
  #allocation1 [shape = 'u32[72,128]{1,0:T(1,128)}', space=vmem, size = 0x9000, scoped, tag = 'internal scratch']
  %s0 = inlined_call_operand.hbm [shape: f32[2,8,64], index: 0, kind: input, shape index: {}]
  %s1 = inlined_call_operand.hbm [shape: f32[8,16], index: 1, kind: input, shape index: {}]
  %s2 = inlined_call_operand.hbm [shape: f32[8,16], index: 2, kind: input, shape index: {}]
  %s3 = inlined_call_operand.vmem [shape: bf16[64,192], index: 3, kind: input, shape index: {}]
  %s4 = inlined_call_operand.hbm [shape: bf16[64,64], index: 4, kind: input, shape index: {}]
  %s5 = inlined_call_operand.vmem [shape: bf16[64,384], index: 5, kind: input, shape index: {}]
  %s6 = inlined_call_operand.vmem [shape: bf16[192,64], index: 6, kind: input, shape index: {}]
  %s7 = inlined_call_operand.vmem [shape: f32[1,64], index: 7, kind: input, shape index: {}]
  %s8 = inlined_call_operand.vmem [shape: f32[1,64], index: 8, kind: input, shape index: {}]
  %s9 = inlined_call_operand.hbm [shape: f32[2,8,64], index: 9, kind: output, shape index: {}]
  %s10 = sld [smem:[#allocation0]]
  $region85: #{tpu_custom_call.1} parent=0
    _
  %s12 = ssub.s32 1, %s10
  %s13 = scalar_select 0, %s12, %s10
  $region1: #{tpu_custom_call.1} parent=0
    #allocation2 [shape = 'u8[8192]{0}', space=vmem, size = 0x2000, scoped, tag = 'input window, operand 0']
    #allocation3 [shape = 's32[2]{0}', space=sflag, size = 0x8, scoped, tag = 'scoped memory for tpu_custom_call.1']
    #allocation4 [shape = 's32[2]{0}', space=sflag, size = 0x8, scoped, tag = 'scoped memory for tpu_custom_call.1']
    #allocation5 [shape = 'u8[4096]{0}', space=vmem, size = 0x1000, scoped, tag = 'input window, operand 1, single buffered']
    #allocation6 [shape = 's32[1]{0}', space=sflag, size = 0x4, scoped, tag = 'scoped memory for tpu_custom_call.1']
    #allocation7 [shape = 'u8[4096]{0}', space=vmem, size = 0x1000, scoped, tag = 'input window, operand 2, single buffered']
    #allocation8 [shape = 'u8[16384]{0}', space=vmem, size = 0x4000, scoped, tag = 'input window, operand 4, single buffered']
    #allocation9 [shape = 's32[1]{0}', space=sflag, size = 0x4, scoped, tag = 'scoped memory for tpu_custom_call.1']
    #allocation10 [shape = 'u8[8192]{0}', space=vmem, size = 0x2000, scoped, tag = 'output window, operand 0']
    %14 = vsyncpa [#allocation3], 0
    %s15 = scalar_lea.sflag [#allocation3], 1
    %16 = vsyncpa %s15, 0
    %17 = vsyncpa [#allocation6], 0
    %18 = vsyncpa [#allocation9], 0
    %19 = vsyncpa [#allocation4], 0
    %s20 = scalar_lea.sflag [#allocation4], 1
    %21 = vsyncpa %s20, 0
    loop: start=0, step=1, limit=4
    $region2: #{tpu_custom_call.1} parent=1 // loop_pre_header
      _
    $region3: #{tpu_custom_call.1} parent=1 // loop_header
      %s23 = sphi 0, %s27
      %p24 = scmp.ge.s32.totalorder %s23, 4
      %s33 = sphi 0, %s35
      %s36 = sphi 0, %s33
      %s37 = sphi 0, %s36
      %s53 = sphi 0, %s37
      %s57 = sphi 0, %s57
      %s59 = sphi 0, %s57
      %s60 = sphi 0, %s59
      %s74 = sphi 0, %s60
      %s78 = sphi 0, %s78
      %s80 = sphi 0, %s78
      %s81 = sphi 0, %s80
      %s95 = sphi 0, %s81
      %s99 = sphi 0, %s99
      %s101 = sphi 0, %s99
      %s102 = sphi 0, %s101
      %s116 = sphi 0, %s102
      %s120 = sphi 0, %s120
      %s122 = sphi 0, %s120
      %s123 = sphi 0, %s122
      %s137 = sphi 0, %s123
      %s141 = sphi 0, %s141
      %s143 = sphi 0, %s141
      %s144 = sphi 0, %s143
      %s158 = sphi 0, %s144
      %s162 = sphi 0, %s162
      %s164 = sphi 0, %s162
      %s165 = sphi 0, %s164
      %s179 = sphi 0, %s165
      %s183 = sphi 0, %s183
      %s185 = sphi 0, %s183
      %s186 = sphi 0, %s185
      %s200 = sphi 0, %s186
      %s204 = sphi 0, %s204
      %s206 = sphi 0, %s204
      %s207 = sphi 0, %s206
      %s221 = sphi 0, %s207
      %s227 = sphi 0, %s229
      %s230 = sphi 0, %s227
      %s231 = sphi 0, %s230
      %s247 = sphi 0, %s231
    $region4: #{tpu_custom_call.1} parent=1 // loop_header_branch
      %26 = sbr.rel (%p24) target = $region8
    $region5: #{tpu_custom_call.1} parent=1 // loop_body
      %s28 = ssub.s32 %s23, 1
      %s29 = ssub.s32 %s23, 2
      %s30 = sadd.s32 %s23, 1
      %s31 = ssub.s32 %s23, %s30
      %p32 = scmp.eq.s32.totalorder %s31, 0
      %s34 = sadd.s32 %s33, 1
      %s35 = scalar_select %p32, %s33, %s34
      %p38 = pneg %p32
      %p39 = scmp.eq.s32.totalorder %s23, 1
      %p40 = por %p38, %p39
      %p41 = scmp.ne.s32.totalorder %s33, %s36
      %p42 = scmp.eq.s32.totalorder %s23, 0
      %p43 = por %p41, %p42
      %p44 = scmp.ne.s32.totalorder %s33, %s36
      %p45 = scmp.eq.s32.totalorder %s28, 1
      %p46 = por %p44, %p45
      %p47 = scmp.ne.s32.totalorder %s36, %s37
      %p48 = scmp.eq.s32.totalorder %s28, 0
      %p49 = por %p47, %p48
      %p50 = scmp.ne.s32.totalorder %s36, %s37
      %p51 = scmp.eq.s32.totalorder %s29, 1
      %p52 = por %p50, %p51
      %p54 = scmp.ne.s32.totalorder %s37, %s53
      %p55 = scmp.eq.s32.totalorder %s29, 0
      %p56 = por %p54, %p55
      %s58 = sadd.s32 %s57, 1
      %p61 = scmp.eq.s32.totalorder %s23, 1
      %p62 = scmp.ne.s32.totalorder %s57, %s59
      %p63 = scmp.eq.s32.totalorder %s23, 0
      %p64 = por %p62, %p63
      %p65 = scmp.ne.s32.totalorder %s57, %s59
      %p66 = scmp.eq.s32.totalorder %s28, 1
      %p67 = por %p65, %p66
      %p68 = scmp.ne.s32.totalorder %s59, %s60
      %p69 = scmp.eq.s32.totalorder %s28, 0
      %p70 = por %p68, %p69
      %p71 = scmp.ne.s32.totalorder %s59, %s60
      %p72 = scmp.eq.s32.totalorder %s29, 1
      %p73 = por %p71, %p72
      %p75 = scmp.ne.s32.totalorder %s60, %s74
      %p76 = scmp.eq.s32.totalorder %s29, 0
      %p77 = por %p75, %p76
      %s79 = sadd.s32 %s78, 1
      %p82 = scmp.eq.s32.totalorder %s23, 1
      %p83 = scmp.ne.s32.totalorder %s78, %s80
      %p84 = scmp.eq.s32.totalorder %s23, 0
      %p85 = por %p83, %p84
      %p86 = scmp.ne.s32.totalorder %s78, %s80
      %p87 = scmp.eq.s32.totalorder %s28, 1
      %p88 = por %p86, %p87
      %p89 = scmp.ne.s32.totalorder %s80, %s81
      %p90 = scmp.eq.s32.totalorder %s28, 0
      %p91 = por %p89, %p90
      %p92 = scmp.ne.s32.totalorder %s80, %s81
      %p93 = scmp.eq.s32.totalorder %s29, 1
      %p94 = por %p92, %p93
      %p96 = scmp.ne.s32.totalorder %s81, %s95
      %p97 = scmp.eq.s32.totalorder %s29, 0
      %p98 = por %p96, %p97
      %s100 = sadd.s32 %s99, 1
      %p103 = scmp.eq.s32.totalorder %s23, 1
      %p104 = scmp.ne.s32.totalorder %s99, %s101
      %p105 = scmp.eq.s32.totalorder %s23, 0
      %p106 = por %p104, %p105
      %p107 = scmp.ne.s32.totalorder %s99, %s101
      %p108 = scmp.eq.s32.totalorder %s28, 1
      %p109 = por %p107, %p108
      %p110 = scmp.ne.s32.totalorder %s101, %s102
      %p111 = scmp.eq.s32.totalorder %s28, 0
      %p112 = por %p110, %p111
      %p113 = scmp.ne.s32.totalorder %s101, %s102
      %p114 = scmp.eq.s32.totalorder %s29, 1
      %p115 = por %p113, %p114
      %p117 = scmp.ne.s32.totalorder %s102, %s116
      %p118 = scmp.eq.s32.totalorder %s29, 0
      %p119 = por %p117, %p118
      %s121 = sadd.s32 %s120, 1
      %p124 = scmp.eq.s32.totalorder %s23, 1
      %p125 = scmp.ne.s32.totalorder %s120, %s122
      %p126 = scmp.eq.s32.totalorder %s23, 0
      %p127 = por %p125, %p126
      %p128 = scmp.ne.s32.totalorder %s120, %s122
      %p129 = scmp.eq.s32.totalorder %s28, 1
      %p130 = por %p128, %p129
      %p131 = scmp.ne.s32.totalorder %s122, %s123
      %p132 = scmp.eq.s32.totalorder %s28, 0
      %p133 = por %p131, %p132
      %p134 = scmp.ne.s32.totalorder %s122, %s123
      %p135 = scmp.eq.s32.totalorder %s29, 1
      %p136 = por %p134, %p135
      %p138 = scmp.ne.s32.totalorder %s123, %s137
      %p139 = scmp.eq.s32.totalorder %s29, 0
      %p140 = por %p138, %p139
      %s142 = sadd.s32 %s141, 1
      %p145 = scmp.eq.s32.totalorder %s23, 1
      %p146 = scmp.ne.s32.totalorder %s141, %s143
      %p147 = scmp.eq.s32.totalorder %s23, 0
      %p148 = por %p146, %p147
      %p149 = scmp.ne.s32.totalorder %s141, %s143
      %p150 = scmp.eq.s32.totalorder %s28, 1
      %p151 = por %p149, %p150
      %p152 = scmp.ne.s32.totalorder %s143, %s144
      %p153 = scmp.eq.s32.totalorder %s28, 0
      %p154 = por %p152, %p153
      %p155 = scmp.ne.s32.totalorder %s143, %s144
      %p156 = scmp.eq.s32.totalorder %s29, 1
      %p157 = por %p155, %p156
      %p159 = scmp.ne.s32.totalorder %s144, %s158
      %p160 = scmp.eq.s32.totalorder %s29, 0
      %p161 = por %p159, %p160
      %s163 = sadd.s32 %s162, 1
      %p166 = scmp.eq.s32.totalorder %s23, 1
      %p167 = scmp.ne.s32.totalorder %s162, %s164
      %p168 = scmp.eq.s32.totalorder %s23, 0
      %p169 = por %p167, %p168
      %p170 = scmp.ne.s32.totalorder %s162, %s164
      %p171 = scmp.eq.s32.totalorder %s28, 1
      %p172 = por %p170, %p171
      %p173 = scmp.ne.s32.totalorder %s164, %s165
      %p174 = scmp.eq.s32.totalorder %s28, 0
      %p175 = por %p173, %p174
      %p176 = scmp.ne.s32.totalorder %s164, %s165
      %p177 = scmp.eq.s32.totalorder %s29, 1
      %p178 = por %p176, %p177
      %p180 = scmp.ne.s32.totalorder %s165, %s179
      %p181 = scmp.eq.s32.totalorder %s29, 0
      %p182 = por %p180, %p181
      %s184 = sadd.s32 %s183, 1
      %p187 = scmp.eq.s32.totalorder %s23, 1
      %p188 = scmp.ne.s32.totalorder %s183, %s185
      %p189 = scmp.eq.s32.totalorder %s23, 0
      %p190 = por %p188, %p189
      %p191 = scmp.ne.s32.totalorder %s183, %s185
      %p192 = scmp.eq.s32.totalorder %s28, 1
      %p193 = por %p191, %p192
      %p194 = scmp.ne.s32.totalorder %s185, %s186
      %p195 = scmp.eq.s32.totalorder %s28, 0
      %p196 = por %p194, %p195
      %p197 = scmp.ne.s32.totalorder %s185, %s186
      %p198 = scmp.eq.s32.totalorder %s29, 1
      %p199 = por %p197, %p198
      %p201 = scmp.ne.s32.totalorder %s186, %s200
      %p202 = scmp.eq.s32.totalorder %s29, 0
      %p203 = por %p201, %p202
      %s205 = sadd.s32 %s204, 1
      %p208 = scmp.eq.s32.totalorder %s23, 1
      %p209 = scmp.ne.s32.totalorder %s204, %s206
      %p210 = scmp.eq.s32.totalorder %s23, 0
      %p211 = por %p209, %p210
      %p212 = scmp.ne.s32.totalorder %s204, %s206
      %p213 = scmp.eq.s32.totalorder %s28, 1
      %p214 = por %p212, %p213
      %p215 = scmp.ne.s32.totalorder %s206, %s207
      %p216 = scmp.eq.s32.totalorder %s28, 0
      %p217 = por %p215, %p216
      %p218 = scmp.ne.s32.totalorder %s206, %s207
      %p219 = scmp.eq.s32.totalorder %s29, 1
      %p220 = por %p218, %p219
      %p222 = scmp.ne.s32.totalorder %s207, %s221
      %p223 = scmp.eq.s32.totalorder %s29, 0
      %p224 = por %p222, %p223
      %s225 = ssub.s32 %s23, %s30
      %p226 = scmp.eq.s32.totalorder %s225, 0
      %s228 = sadd.s32 %s227, 1
      %s229 = scalar_select %p226, %s227, %s228
      %p232 = pneg %p226
      %p233 = scmp.eq.s32.totalorder %s23, 1
      %p234 = por %p232, %p233
      %p235 = scmp.ne.s32.totalorder %s227, %s230
      %p236 = scmp.eq.s32.totalorder %s23, 0
      %p237 = por %p235, %p236
      %p238 = scmp.ne.s32.totalorder %s227, %s230
      %p239 = scmp.eq.s32.totalorder %s28, 1
      %p240 = por %p238, %p239
      %p241 = scmp.ne.s32.totalorder %s230, %s231
      %p242 = scmp.eq.s32.totalorder %s28, 0
      %p243 = por %p241, %p242
      %p244 = scmp.ne.s32.totalorder %s230, %s231
      %p245 = scmp.eq.s32.totalorder %s29, 1
      %p246 = por %p244, %p245
      %p248 = scmp.ne.s32.totalorder %s231, %s247
      %p249 = scmp.eq.s32.totalorder %s29, 0
      %p250 = por %p248, %p249
      %p251 = scmp.le.s32.totalorder 1, %s23
      %p252 = scmp.lt.s32.totalorder %s23, 3
      %p253 = pnand %p251, %p252
      %p254 = pneg %p253
      // Predicated region
      $region9: #{tpu_custom_call.1} parent=5 // pred_check
        _
      $region10: #{tpu_custom_call.1} parent=5 // pred_check_branch
        %256 = sbr.rel (%p253) target = $region12
      $region11: #{tpu_custom_call.1} parent=5 // pred_region
        %s257 = ssub.s32 %s23, 1
        // Predicated region
        $region13: #{tpu_custom_call.1} parent=11 // pred_check
          %p258 = pneg %p70
        $region14: #{tpu_custom_call.1} parent=11 // pred_check_branch
          %260 = sbr.rel (%p258) target = $region16
        $region15: #{tpu_custom_call.1} parent=11 // pred_region
          %262 = vsyncadd [#allocation6], 0
          %s264 = sshll.u32 %s1, 4
          %s265 = int_to_ptr.hbm [resolvable:$true] %s264
          %s266 = sshll.u32 [#allocation5], 4
          %s267 = int_to_ptr.vmem [resolvable:$true] %s266
          %269 = dma.hbm_to_vmem [thread:$0]  %s265, 128, %s267, [#allocation6]
        $region16: #{tpu_custom_call.1} parent=11 // pred_fallthru
          _
        // Predicated region
        $region17: #{tpu_custom_call.1} parent=11 // pred_check
          %p270 = pneg %p91
        $region18: #{tpu_custom_call.1} parent=11 // pred_check_branch
          %272 = sbr.rel (%p270) target = $region20
        $region19: #{tpu_custom_call.1} parent=11 // pred_region
          %274 = vsyncadd [#allocation6], 0
          %s276 = sshll.u32 %s2, 4
          %s277 = int_to_ptr.hbm [resolvable:$true] %s276
          %s278 = sshll.u32 [#allocation7], 4
          %s279 = int_to_ptr.vmem [resolvable:$true] %s278
          %281 = dma.hbm_to_vmem [thread:$0]  %s277, 128, %s279, [#allocation6]
        $region20: #{tpu_custom_call.1} parent=11 // pred_fallthru
          _
        // Predicated region
        $region21: #{tpu_custom_call.1} parent=11 // pred_check
          %p282 = pneg %p112
        $region22: #{tpu_custom_call.1} parent=11 // pred_check_branch
          %284 = sbr.rel (%p282) target = $region24
        $region23: #{tpu_custom_call.1} parent=11 // pred_region
          _
        $region24: #{tpu_custom_call.1} parent=11 // pred_fallthru
          _
        // Predicated region
        $region25: #{tpu_custom_call.1} parent=11 // pred_check
          %p285 = pneg %p133
        $region26: #{tpu_custom_call.1} parent=11 // pred_check_branch
          %287 = sbr.rel (%p285) target = $region28
        $region27: #{tpu_custom_call.1} parent=11 // pred_region
          %289 = vsyncadd [#allocation9], 0
          %s290 = sshll.u32 %s4, 4
          %s291 = int_to_ptr.hbm [resolvable:$true] %s290
          %s292 = sshll.u32 [#allocation8], 4
          %s293 = int_to_ptr.vmem [resolvable:$true] %s292
          %298 = dma.hbm_to_vmem [thread:$0]  %s291, 512, %s293, [#allocation9], 64, 64, 4
        $region28: #{tpu_custom_call.1} parent=11 // pred_fallthru
          _
        // Predicated region
        $region29: #{tpu_custom_call.1} parent=11 // pred_check
          %p299 = pneg %p154
        $region30: #{tpu_custom_call.1} parent=11 // pred_check_branch
          %301 = sbr.rel (%p299) target = $region32
        $region31: #{tpu_custom_call.1} parent=11 // pred_region
          _
        $region32: #{tpu_custom_call.1} parent=11 // pred_fallthru
          _
        // Predicated region
        $region33: #{tpu_custom_call.1} parent=11 // pred_check
          %p302 = pneg %p175
        $region34: #{tpu_custom_call.1} parent=11 // pred_check_branch
          %304 = sbr.rel (%p302) target = $region36
        $region35: #{tpu_custom_call.1} parent=11 // pred_region
          _
        $region36: #{tpu_custom_call.1} parent=11 // pred_fallthru
          _
        // Predicated region
        $region37: #{tpu_custom_call.1} parent=11 // pred_check
          %p305 = pneg %p196
        $region38: #{tpu_custom_call.1} parent=11 // pred_check_branch
          %307 = sbr.rel (%p305) target = $region40
        $region39: #{tpu_custom_call.1} parent=11 // pred_region
          _
        $region40: #{tpu_custom_call.1} parent=11 // pred_fallthru
          _
        // Predicated region
        $region41: #{tpu_custom_call.1} parent=11 // pred_check
          %p308 = pneg %p217
        $region42: #{tpu_custom_call.1} parent=11 // pred_check_branch
          %310 = sbr.rel (%p308) target = $region44
        $region43: #{tpu_custom_call.1} parent=11 // pred_region
          _
        $region44: #{tpu_custom_call.1} parent=11 // pred_fallthru
          _
      $region12: #{tpu_custom_call.1} parent=5 // pred_fallthru
        _
      %p311 = scmp.lt.s32.totalorder %s23, 2
      // Predicated region
      $region45: #{tpu_custom_call.1} parent=5 // pred_check
        %p312 = pneg %p311
      $region46: #{tpu_custom_call.1} parent=5 // pred_check_branch
        %314 = sbr.rel (%p312) target = $region48
      $region47: #{tpu_custom_call.1} parent=5 // pred_region
        // Predicated region
        $region49: #{tpu_custom_call.1} parent=47 // pred_check
          %p315 = pneg %p43
        $region50: #{tpu_custom_call.1} parent=47 // pred_check_branch
          %317 = sbr.rel (%p315) target = $region52
        $region51: #{tpu_custom_call.1} parent=47 // pred_region
          %s318 = sand.u32 %s33, 1
          %s319 = scalar_lea.sflag [#allocation3], %s318
          %s320 = sand.u32 %s33, 1
          %s321 = smul.addr %s320, 8
          %s322 = scalar_lea.vmem [#allocation2], %s321
          %324 = vsyncadd %s319, 0
          %s325 = smul.addr %s23, 8
          %s326 = scalar_lea.hbm %s0, %s325
          %s328 = sshll.u32 %s326, 4
          %s329 = int_to_ptr.hbm [resolvable:$true] %s328
          %s330 = sshll.u32 %s322, 4
          %s331 = int_to_ptr.vmem [resolvable:$true] %s330
          %333 = dma.hbm_to_vmem [thread:$0]  %s329, 128, %s331, %s319
        $region52: #{tpu_custom_call.1} parent=47 // pred_fallthru
          _
      $region48: #{tpu_custom_call.1} parent=5 // pred_fallthru
        _
      %p334 = scmp.le.s32.totalorder 1, %s23
      %p335 = scmp.lt.s32.totalorder %s23, 3
      %p336 = pnand %p334, %p335
      %p337 = pneg %p336
      // Predicated region
      $region53: #{tpu_custom_call.1} parent=5 // pred_check
        _
      $region54: #{tpu_custom_call.1} parent=5 // pred_check_branch
        %339 = sbr.rel (%p336) target = $region56
      $region55: #{tpu_custom_call.1} parent=5 // pred_region
        %s340 = ssub.s32 %s23, 1
        %s341 = sand.u32 %s36, 1
        %s342 = scalar_lea.sflag [#allocation3], %s341
        %s343 = sand.u32 %s36, 1
        %s344 = smul.addr %s343, 8
        %s345 = scalar_lea.vmem [#allocation2], %s344
        // Predicated region
        $region57: #{tpu_custom_call.1} parent=55 // pred_check
          %p346 = pneg %p49
        $region58: #{tpu_custom_call.1} parent=55 // pred_check_branch
          %348 = sbr.rel (%p346) target = $region60
        $region59: #{tpu_custom_call.1} parent=55 // pred_region
          %350 = dma.done %s342, 128
        $region60: #{tpu_custom_call.1} parent=55 // pred_fallthru
          _
        // Predicated region
        $region61: #{tpu_custom_call.1} parent=55 // pred_check
          %p351 = pneg %p70
        $region62: #{tpu_custom_call.1} parent=55 // pred_check_branch
          %353 = sbr.rel (%p351) target = $region64
        $region63: #{tpu_custom_call.1} parent=55 // pred_region
          %355 = dma.done [#allocation6], 128
        $region64: #{tpu_custom_call.1} parent=55 // pred_fallthru
          _
        // Predicated region
        $region65: #{tpu_custom_call.1} parent=55 // pred_check
          %p356 = pneg %p91
        $region66: #{tpu_custom_call.1} parent=55 // pred_check_branch
          %358 = sbr.rel (%p356) target = $region68
        $region67: #{tpu_custom_call.1} parent=55 // pred_region
          %360 = dma.done [#allocation6], 128
        $region68: #{tpu_custom_call.1} parent=55 // pred_fallthru
          _
        // Predicated region
        $region69: #{tpu_custom_call.1} parent=55 // pred_check
          %p361 = pneg %p133
        $region70: #{tpu_custom_call.1} parent=55 // pred_check_branch
          %363 = sbr.rel (%p361) target = $region72
        $region71: #{tpu_custom_call.1} parent=55 // pred_region
          %365 = dma.done [#allocation9], 512
        $region72: #{tpu_custom_call.1} parent=55 // pred_fallthru
          _
        %s366 = sand.u32 %s36, 1
        %s367 = scalar_lea.sflag [#allocation3], %s366
        %s368 = sand.u32 %s36, 1
        %s369 = smul.addr %s368, 8
        %s370 = scalar_lea.vmem [#allocation2], %s369
        %p371 = pneg %p49
        %p372 = pneg %p46
        %p373 = pneg %p70
        %p374 = pneg %p67
        %p375 = pneg %p91
        %p376 = pneg %p88
        %p377 = pneg %p112
        %p378 = pneg %p109
        %p379 = pneg %p133
        %p380 = pneg %p130
        %p381 = pneg %p154
        %p382 = pneg %p151
        %p383 = pneg %p175
        %p384 = pneg %p172
        %p385 = pneg %p196
        %p386 = pneg %p193
        %p387 = pneg %p217
        %p388 = pneg %p214
        %p389 = pneg %p243
        %p390 = pneg %p240
        %s391 = sand.u32 %s230, 1
        %s392 = scalar_lea.sflag [#allocation4], %s391
        %s393 = sand.u32 %s230, 1
        %s394 = smul.addr %s393, 8
        %s395 = scalar_lea.vmem [#allocation10], %s394
        %v397 = vld [vmem:[%s345] sm:$0xff]
        %v398 = vld [vmem:[%s7] sm:$0x1]
        %v399 = vmul.f32 %v397, %v397
        %vm400 = vcmask 523264
        %v401 = vsel %vm400, %v399, 0.0
        %402 = vadd.xlane.f32.xlu0 %v401
        %v403 = vpop.xlane.xlu0 %402
        %v404 = vrcp.pop 64.0
        %v405 = vmul.f32 64.0, %v404
        %v406 = vsub.f32 1.0, %v405
        %v407 = vmul.f32 %v404, %v406
        %v408 = vadd.f32 %v404, %v407
        %vm409 = vweird.f32 %v404
        %v410 = vsel %vm409, %v404, %v408
        %v411 = vmul.f32 %v403, %v410
        %v412 = vadd.f32 %v411, 1e-05
        %v413 = vrsqrt.pop %v412
        %v414 = vmul.f32 %v413, %v412
        %v415 = vmul.f32 %v414, %v413
        %v416 = vmul.f32 0.5, %v415
        %v417 = vsub.f32 1.5, %v416
        %v418 = vmul.f32 %v413, %v417
        %vm419 = vweird.f32 %v412
        %vm420 = vweird.f32 %v413
        %vm421 = vmor %vm419, %vm420
        %v422 = vsel %vm421, %v413, %v418
        %v423 = vmul.f32 %v397, %v422
        %v425 = vperm.slane %v398, 0
        %v427 = vmul.f32 %v423, %v425
        %v428 = vpack.c.bf16 %v427, %v427
        %v429 = vld [vmem:[%s3] sm:$0xff]
        %v430 = vld [vmem:[%s3 + $0x8] sm:$0xff]
        %v431 = vld [vmem:[%s3 + $0x10] sm:$0xff]
        %v432 = vld [vmem:[%s3 + $0x18] sm:$0xff]
        %v433 = vld [vmem:[%s3 + $0x20] sm:$0xff]
        %v434 = vld [vmem:[%s3 + $0x28] sm:$0xff]
        %v435 = vld [vmem:[%s3 + $0x30] sm:$0xff]
        %v436 = vld [vmem:[%s3 + $0x38] sm:$0xff]
        %v445 = vunpack.c.l.b16 %v429
        %v446 = vunpack.c.h.b16 %v429
        %v447 = vunpack.c.l.b16 %v430
        %v448 = vunpack.c.h.b16 %v430
        %v449 = vunpack.c.l.b16 %v431
        %v450 = vunpack.c.h.b16 %v431
        %v451 = vunpack.c.l.b16 %v432
        %v452 = vunpack.c.h.b16 %v432
        %v453 = vunpack.c.l.b16 %v433
        %v454 = vunpack.c.h.b16 %v433
        %v455 = vunpack.c.l.b16 %v434
        %v456 = vunpack.c.h.b16 %v434
        %v457 = vunpack.c.l.b16 %v435
        %v458 = vunpack.c.h.b16 %v435
        %v459 = vunpack.c.l.b16 %v436
        %v460 = vunpack.c.h.b16 %v436
        %v461 = vpack.c.b16 %v447, %v445
        %v462 = vpack.c.b16 %v448, %v446
        %v463 = vpack.c.b16 %v451, %v449
        %v464 = vpack.c.b16 %v452, %v450
        %v465 = vpack.c.b16 %v455, %v453
        %v466 = vpack.c.b16 %v456, %v454
        %v467 = vpack.c.b16 %v459, %v457
        %v468 = vpack.c.b16 %v460, %v458
        %v478 = vsel %vm400, %v428, 0
        %480 = vmatpush.bf16.msra.mxu0 0
        %481 = vmatpush.bf16.msra.mxu0 0
        %482 = vmatpush.bf16.msra.mxu0 0
        %483 = vmatpush.bf16.msra.mxu0 0
        %484 = vmatpush.bf16.msra.mxu0 %v467
        %485 = vmatpush.bf16.msra.mxu0 %v465
        %486 = vmatpush.bf16.msra.mxu0 %v463
        %487 = vmatpush.bf16.msra.mxu0 %v461
        %488 = vmatmul.bf16.gmra.mxu0 %v478
        %v489 = vpop.f32.mrf.mxu0
        %v490 = vadd.f32 0.0, %v489
        %v491 = vpop.f32.mrf.mxu0
        %492 = vdwg.mxu0
        %493 = vmatpush.bf16.msra.mxu0 0
        %494 = vmatpush.bf16.msra.mxu0 0
        %495 = vmatpush.bf16.msra.mxu0 0
        %496 = vmatpush.bf16.msra.mxu0 0
        %497 = vmatpush.bf16.msra.mxu0 %v468
        %498 = vmatpush.bf16.msra.mxu0 %v466
        %499 = vmatpush.bf16.msra.mxu0 %v464
        %500 = vmatpush.bf16.msra.mxu0 %v462
        %501 = vmatmul.bf16.gmra.mxu0 %v478
        %v502 = vpop.f32.mrf.mxu0
        %v503 = vadd.f32 0.0, %v502
        %v504 = vpop.f32.mrf.mxu0
        %505 = vdwg.mxu0
        %507 = vrot.lane.b32.xlu0 %v490, 112
        %v508 = vpop.permute.xlu0 %507
        %510 = vrot.lane.b32.xlu0 %v490, 96
        %v511 = vpop.permute.xlu0 %510
        %513 = vrot.lane.b32.xlu0 %v490, 80
        %v514 = vpop.permute.xlu0 %513
        %v516 = vpack.c.bf16 %v503, %v503
        %518 = vrot.lane.b32.xlu0 %v516, 112
        %v519 = vpop.permute.xlu0 %518
        %520 = vrot.lane.b32.xlu0 %v516, 96
        %v521 = vpop.permute.xlu0 %520
        %522 = vrot.lane.b32.xlu0 %v516, 80
        %v523 = vpop.permute.xlu0 %522
        %v524 = vld [vmem:[#allocation5] sm:$0xff]
        %v525 = vld [vmem:[#allocation7] sm:$0xff]
        %526 = vrot.lane.b32.xlu0 %v490, 120
        %v527 = vpop.permute.xlu0 %526
        %528 = vrot.lane.b32.xlu0 %v508, 120
        %v529 = vpop.permute.xlu0 %528
        %530 = vrot.lane.b32.xlu0 %v511, 120
        %v531 = vpop.permute.xlu0 %530
        %532 = vrot.lane.b32.xlu0 %v514, 120
        %v533 = vpop.permute.xlu0 %532
        %538 = vrot.lane.b32.xlu0 %v490, 8
        %v539 = vpop.permute.xlu0 %538
        %540 = vrot.lane.b32.xlu0 %v508, 8
        %v541 = vpop.permute.xlu0 %540
        %542 = vrot.lane.b32.xlu0 %v511, 8
        %v543 = vpop.permute.xlu0 %542
        %544 = vrot.lane.b32.xlu0 %v514, 8
        %v545 = vpop.permute.xlu0 %544
        %vm550 = vcmask 64512
        %v551 = vsel %vm550, %v527, %v539
        %v552 = vsel %vm550, %v529, %v541
        %v553 = vsel %vm550, %v531, %v543
        %v554 = vsel %vm550, %v533, %v545
        %v555 = vmul.f32 %v490, %v524
        %v556 = vmul.f32 %v508, %v524
        %v557 = vmul.f32 %v511, %v524
        %v558 = vmul.f32 %v514, %v524
        %v559 = vmul.f32 %v551, %v525
        %v560 = vmul.f32 %v552, %v525
        %v561 = vmul.f32 %v553, %v525
        %v562 = vmul.f32 %v554, %v525
        %v563 = vadd.f32 %v555, %v559
        %v564 = vadd.f32 %v556, %v560
        %v565 = vadd.f32 %v557, %v561
        %v566 = vadd.f32 %v558, %v562
        %v567 = vpack.c.bf16 %v563, %v563
        %v568 = vpack.c.bf16 %v564, %v564
        %v569 = vpack.c.bf16 %v565, %v565
        %v570 = vpack.c.bf16 %v566, %v566
        %571 = vrot.lane.b32.xlu0 %v490, 56
        %v572 = vpop.permute.xlu0 %571
        %573 = vrot.lane.b32.xlu0 %v508, 56
        %v574 = vpop.permute.xlu0 %573
        %575 = vrot.lane.b32.xlu0 %v511, 56
        %v576 = vpop.permute.xlu0 %575
        %577 = vrot.lane.b32.xlu0 %v514, 56
        %v578 = vpop.permute.xlu0 %577
        %583 = vrot.lane.b32.xlu0 %v490, 72
        %v584 = vpop.permute.xlu0 %583
        %585 = vrot.lane.b32.xlu0 %v508, 72
        %v586 = vpop.permute.xlu0 %585
        %587 = vrot.lane.b32.xlu0 %v511, 72
        %v588 = vpop.permute.xlu0 %587
        %589 = vrot.lane.b32.xlu0 %v514, 72
        %v590 = vpop.permute.xlu0 %589
        %v595 = vsel %vm550, %v572, %v584
        %v596 = vsel %vm550, %v574, %v586
        %v597 = vsel %vm550, %v576, %v588
        %v598 = vsel %vm550, %v578, %v590
        %600 = vrot.lane.b32.xlu0 %v524, 64
        %v601 = vpop.permute.xlu0 %600
        %v603 = vmul.f32 %v490, %v601
        %v604 = vmul.f32 %v508, %v601
        %v605 = vmul.f32 %v511, %v601
        %v606 = vmul.f32 %v514, %v601
        %v607 = vmul.f32 %v595, %v525
        %v608 = vmul.f32 %v596, %v525
        %v609 = vmul.f32 %v597, %v525
        %v610 = vmul.f32 %v598, %v525
        %615 = vrot.lane.b32.xlu0 %v607, 64
        %v616 = vpop.permute.xlu0 %615
        %617 = vrot.lane.b32.xlu0 %v608, 64
        %v618 = vpop.permute.xlu0 %617
        %619 = vrot.lane.b32.xlu0 %v609, 64
        %v620 = vpop.permute.xlu0 %619
        %621 = vrot.lane.b32.xlu0 %v610, 64
        %v622 = vpop.permute.xlu0 %621
        %v627 = vadd.f32 %v603, %v616
        %v628 = vadd.f32 %v604, %v618
        %v629 = vadd.f32 %v605, %v620
        %v630 = vadd.f32 %v606, %v622
        %v631 = vpack.c.bf16 %v627, %v627
        %v632 = vpack.c.bf16 %v628, %v628
        %v633 = vpack.c.bf16 %v629, %v629
        %v634 = vpack.c.bf16 %v630, %v630
        %v636 = vunpack.c.l.b16 %v631
        %v637 = vpack.c.b16 %v636, %v636
        %638 = vrot.lane.b32.xlu0 %v637, 64
        %v639 = vpop.permute.xlu0 %638
        %vm640 = vcmask 130048
        %v642 = vsel %vm640, %v567, 0
        %v645 = vsel %vm640, %v639, 0
        %647 = vmatpush.bf16.xpose.msra.mxu0 0
        %648 = vmatpush.bf16.xpose.msra.mxu0 0
        %649 = vmatpush.bf16.xpose.msra.mxu0 0
        %650 = vmatpush.bf16.xpose.msra.mxu0 0
        %651 = vmatpush.bf16.xpose.msra.mxu0 0
        %652 = vmatpush.bf16.xpose.msra.mxu0 0
        %653 = vmatpush.bf16.xpose.msra.mxu0 0
        %654 = vmatpush.bf16.xpose.msra.mxu0 %v645
        %655 = vmatmul.bf16.gmra.mxu0 %v642
        %v656 = vpop.f32.mrf.mxu0
        %v657 = vadd.f32 0.0, %v656
        %v658 = vpop.f32.mrf.mxu0
        %659 = vdwg.mxu0
        %v661 = vunpack.c.l.b16 %v632
        %v662 = vpack.c.b16 %v661, %v661
        %663 = vrot.lane.b32.xlu0 %v662, 64
        %v664 = vpop.permute.xlu0 %663
        %v666 = vsel %vm640, %v568, 0
        %v669 = vsel %vm640, %v664, 0
        %671 = vmatpush.bf16.xpose.msra.mxu0 0
        %672 = vmatpush.bf16.xpose.msra.mxu0 0
        %673 = vmatpush.bf16.xpose.msra.mxu0 0
        %674 = vmatpush.bf16.xpose.msra.mxu0 0
        %675 = vmatpush.bf16.xpose.msra.mxu0 0
        %676 = vmatpush.bf16.xpose.msra.mxu0 0
        %677 = vmatpush.bf16.xpose.msra.mxu0 0
        %678 = vmatpush.bf16.xpose.msra.mxu0 %v669
        %679 = vmatmul.bf16.gmra.mxu0 %v666
        %v680 = vpop.f32.mrf.mxu0
        %v681 = vadd.f32 0.0, %v680
        %v682 = vpop.f32.mrf.mxu0
        %683 = vdwg.mxu0
        %v685 = vunpack.c.l.b16 %v633
        %v686 = vpack.c.b16 %v685, %v685
        %687 = vrot.lane.b32.xlu0 %v686, 64
        %v688 = vpop.permute.xlu0 %687
        %v690 = vsel %vm640, %v569, 0
        %v693 = vsel %vm640, %v688, 0
        %695 = vmatpush.bf16.xpose.msra.mxu0 0
        %696 = vmatpush.bf16.xpose.msra.mxu0 0
        %697 = vmatpush.bf16.xpose.msra.mxu0 0
        %698 = vmatpush.bf16.xpose.msra.mxu0 0
        %699 = vmatpush.bf16.xpose.msra.mxu0 0
        %700 = vmatpush.bf16.xpose.msra.mxu0 0
        %701 = vmatpush.bf16.xpose.msra.mxu0 0
        %702 = vmatpush.bf16.xpose.msra.mxu0 %v693
        %703 = vmatmul.bf16.gmra.mxu0 %v690
        %v704 = vpop.f32.mrf.mxu0
        %v705 = vadd.f32 0.0, %v704
        %v706 = vpop.f32.mrf.mxu0
        %707 = vdwg.mxu0
        %v709 = vunpack.c.l.b16 %v634
        %v710 = vpack.c.b16 %v709, %v709
        %711 = vrot.lane.b32.xlu0 %v710, 64
        %v712 = vpop.permute.xlu0 %711
        %v714 = vsel %vm640, %v570, 0
        %v717 = vsel %vm640, %v712, 0
        %719 = vmatpush.bf16.xpose.msra.mxu0 0
        %720 = vmatpush.bf16.xpose.msra.mxu0 0
        %721 = vmatpush.bf16.xpose.msra.mxu0 0
        %722 = vmatpush.bf16.xpose.msra.mxu0 0
        %723 = vmatpush.bf16.xpose.msra.mxu0 0
        %724 = vmatpush.bf16.xpose.msra.mxu0 0
        %725 = vmatpush.bf16.xpose.msra.mxu0 0
        %726 = vmatpush.bf16.xpose.msra.mxu0 %v717
        %727 = vmatmul.bf16.gmra.mxu0 %v714
        %v728 = vpop.f32.mrf.mxu0
        %v729 = vadd.f32 0.0, %v728
        %v730 = vpop.f32.mrf.mxu0
        %731 = vdwg.mxu0
        %v732 = vlaneseq
        %v733 = vshrl.u32 %v732, 7
        %v734 = vlaneseq
        %v735 = vand.u32 %v734, 127
        %vm736 = vcmp.ge.s32.totalorder %v733, %v735
        %v737 = vsel %vm736, 1, 0
        %vm738 = vcmp.eq.s32.totalorder %v737, 1
        %v739 = vsel %vm738, %v657, -inf
        %v740 = vsel %vm738, %v681, -inf
        %v741 = vsel %vm738, %v705, -inf
        %v742 = vsel %vm738, %v729, -inf
        %v743 = vsel %vm550, %v739, -inf
        %744 = vmax.xlane.f32.xlu0 %v743
        %v745 = vpop.xlane.xlu0 %744
        %v746 = vsel %vm550, %v740, -inf
        %747 = vmax.xlane.f32.xlu0 %v746
        %v748 = vpop.xlane.xlu0 %747
        %v749 = vsel %vm550, %v741, -inf
        %750 = vmax.xlane.f32.xlu0 %v749
        %v751 = vpop.xlane.xlu0 %750
        %v752 = vsel %vm550, %v742, -inf
        %753 = vmax.xlane.f32.xlu0 %v752
        %v754 = vpop.xlane.xlu0 %753
        %v755 = vsub.f32 %v739, %v745
        %v756 = vsub.f32 %v740, %v748
        %v757 = vsub.f32 %v741, %v751
        %v758 = vsub.f32 %v742, %v754
        %v759 = vmul.f32 %v755, 1.442695
        %v760 = vpow.pop %v759
        %v761 = vmul.f32 %v756, 1.442695
        %v762 = vpow.pop %v761
        %v763 = vmul.f32 %v757, 1.442695
        %v764 = vpow.pop %v763
        %v765 = vmul.f32 %v758, 1.442695
        %v766 = vpow.pop %v765
        %v767 = vsel %vm550, %v760, 0.0
        %768 = vadd.xlane.f32.xlu0 %v767
        %v769 = vpop.xlane.xlu0 %768
        %v770 = vsel %vm550, %v762, 0.0
        %771 = vadd.xlane.f32.xlu0 %v770
        %v772 = vpop.xlane.xlu0 %771
        %v773 = vsel %vm550, %v764, 0.0
        %774 = vadd.xlane.f32.xlu0 %v773
        %v775 = vpop.xlane.xlu0 %774
        %v776 = vsel %vm550, %v766, 0.0
        %777 = vadd.xlane.f32.xlu0 %v776
        %v778 = vpop.xlane.xlu0 %777
        %v779 = vrcp.pop %v769
        %v780 = vmul.f32 %v769, %v779
        %v781 = vsub.f32 1.0, %v780
        %v782 = vmul.f32 %v779, %v781
        %v783 = vadd.f32 %v779, %v782
        %vm784 = vweird.f32 %v769
        %vm785 = vweird.f32 %v779
        %vm786 = vmor %vm784, %vm785
        %v787 = vsel %vm786, %v779, %v783
        %v788 = vand.u32 2147483647, %v769
        %vm789 = vcmp.eq.f32.partialorder %v788, 8.507059e+37
        %v790 = vand.u32 %v769, 2147483648
        %v791 = vor.u32 1.1754944e-38, %v790
        %v792 = vsel %vm789, %v791, %v787
        %v793 = vmul.f32 %v760, %v792
        %v794 = vrcp.pop %v772
        %v795 = vmul.f32 %v772, %v794
        %v796 = vsub.f32 1.0, %v795
        %v797 = vmul.f32 %v794, %v796
        %v798 = vadd.f32 %v794, %v797
        %vm799 = vweird.f32 %v772
        %vm800 = vweird.f32 %v794
        %vm801 = vmor %vm799, %vm800
        %v802 = vsel %vm801, %v794, %v798
        %v803 = vand.u32 2147483647, %v772
        %vm804 = vcmp.eq.f32.partialorder %v803, 8.507059e+37
        %v805 = vand.u32 %v772, 2147483648
        %v806 = vor.u32 1.1754944e-38, %v805
        %v807 = vsel %vm804, %v806, %v802
        %v808 = vmul.f32 %v762, %v807
        %v809 = vrcp.pop %v775
        %v810 = vmul.f32 %v775, %v809
        %v811 = vsub.f32 1.0, %v810
        %v812 = vmul.f32 %v809, %v811
        %v813 = vadd.f32 %v809, %v812
        %vm814 = vweird.f32 %v775
        %vm815 = vweird.f32 %v809
        %vm816 = vmor %vm814, %vm815
        %v817 = vsel %vm816, %v809, %v813
        %v818 = vand.u32 2147483647, %v775
        %vm819 = vcmp.eq.f32.partialorder %v818, 8.507059e+37
        %v820 = vand.u32 %v775, 2147483648
        %v821 = vor.u32 1.1754944e-38, %v820
        %v822 = vsel %vm819, %v821, %v817
        %v823 = vmul.f32 %v764, %v822
        %v824 = vrcp.pop %v778
        %v825 = vmul.f32 %v778, %v824
        %v826 = vsub.f32 1.0, %v825
        %v827 = vmul.f32 %v824, %v826
        %v828 = vadd.f32 %v824, %v827
        %vm829 = vweird.f32 %v778
        %vm830 = vweird.f32 %v824
        %vm831 = vmor %vm829, %vm830
        %v832 = vsel %vm831, %v824, %v828
        %v833 = vand.u32 2147483647, %v778
        %vm834 = vcmp.eq.f32.partialorder %v833, 8.507059e+37
        %v835 = vand.u32 %v778, 2147483648
        %v836 = vor.u32 1.1754944e-38, %v835
        %v837 = vsel %vm834, %v836, %v832
        %v838 = vmul.f32 %v766, %v837
        %v839 = vpack.c.bf16 %v793, %v793
        %v840 = vpack.c.bf16 %v808, %v808
        %v841 = vpack.c.bf16 %v823, %v823
        %v842 = vpack.c.bf16 %v838, %v838
        %v844 = vsel %vm550, %v839, 0
        %vm846 = vcmask 1043456
        %v848 = vsel %vm846, %v516, 0
        %850 = vmatpush.bf16.msra.mxu0 0
        %851 = vmatpush.bf16.msra.mxu0 0
        %852 = vmatpush.bf16.msra.mxu0 0
        %853 = vmatpush.bf16.msra.mxu0 0
        %854 = vmatpush.bf16.msra.mxu0 0
        %855 = vmatpush.bf16.msra.mxu0 0
        %856 = vmatpush.bf16.msra.mxu0 0
        %857 = vmatpush.bf16.msra.mxu0 %v848
        %858 = vmatmul.bf16.gmra.mxu0 %v844
        %v859 = vpop.f32.mrf.mxu0
        %v860 = vadd.f32 0.0, %v859
        %v861 = vpop.f32.mrf.mxu0
        %862 = vdwg.mxu0
        %v864 = vsel %vm550, %v840, 0
        %v867 = vsel %vm846, %v519, 0
        %869 = vmatpush.bf16.msra.mxu0 0
        %870 = vmatpush.bf16.msra.mxu0 0
        %871 = vmatpush.bf16.msra.mxu0 0
        %872 = vmatpush.bf16.msra.mxu0 0
        %873 = vmatpush.bf16.msra.mxu0 0
        %874 = vmatpush.bf16.msra.mxu0 0
        %875 = vmatpush.bf16.msra.mxu0 0
        %876 = vmatpush.bf16.msra.mxu0 %v867
        %877 = vmatmul.bf16.gmra.mxu0 %v864
        %v878 = vpop.f32.mrf.mxu0
        %v879 = vadd.f32 0.0, %v878
        %v880 = vpop.f32.mrf.mxu0
        %881 = vdwg.mxu0
        %v883 = vsel %vm550, %v841, 0
        %v886 = vsel %vm846, %v521, 0
        %888 = vmatpush.bf16.msra.mxu0 0
        %889 = vmatpush.bf16.msra.mxu0 0
        %890 = vmatpush.bf16.msra.mxu0 0
        %891 = vmatpush.bf16.msra.mxu0 0
        %892 = vmatpush.bf16.msra.mxu0 0
        %893 = vmatpush.bf16.msra.mxu0 0
        %894 = vmatpush.bf16.msra.mxu0 0
        %895 = vmatpush.bf16.msra.mxu0 %v886
        %896 = vmatmul.bf16.gmra.mxu0 %v883
        %v897 = vpop.f32.mrf.mxu0
        %v898 = vadd.f32 0.0, %v897
        %v899 = vpop.f32.mrf.mxu0
        %900 = vdwg.mxu0
        %v902 = vsel %vm550, %v842, 0
        %v905 = vsel %vm846, %v523, 0
        %907 = vmatpush.bf16.msra.mxu0 0
        %908 = vmatpush.bf16.msra.mxu0 0
        %909 = vmatpush.bf16.msra.mxu0 0
        %910 = vmatpush.bf16.msra.mxu0 0
        %911 = vmatpush.bf16.msra.mxu0 0
        %912 = vmatpush.bf16.msra.mxu0 0
        %913 = vmatpush.bf16.msra.mxu0 0
        %914 = vmatpush.bf16.msra.mxu0 %v905
        %915 = vmatmul.bf16.gmra.mxu0 %v902
        %v916 = vpop.f32.mrf.mxu0
        %v917 = vadd.f32 0.0, %v916
        %v918 = vpop.f32.mrf.mxu0
        %919 = vdwg.mxu0
        %v920 = vpack.c.bf16 %v860, %v860
        %v921 = vpack.c.bf16 %v879, %v879
        %v922 = vpack.c.bf16 %v898, %v898
        %v923 = vpack.c.bf16 %v917, %v917
        %v925 = vunpack.c.l.b16 %v921
        %v926 = vpack.c.b16 %v925, %v925
        %927 = vrot.lane.b32.xlu0 %v926, 16
        %v928 = vpop.permute.xlu0 %927
        %v930 = vunpack.c.l.b16 %v922
        %v931 = vpack.c.b16 %v930, %v930
        %932 = vrot.lane.b32.xlu0 %v931, 32
        %v933 = vpop.permute.xlu0 %932
        %v935 = vunpack.c.l.b16 %v923
        %v936 = vpack.c.b16 %v935, %v935
        %937 = vrot.lane.b32.xlu0 %v936, 48
        %v938 = vpop.permute.xlu0 %937
        %v941 = vsel %vm640, %v920, %v928
        %vm942 = vcmask 261120
        %v944 = vsel %vm942, %v941, %v933
        %vm945 = vcmask 392192
        %v947 = vsel %vm945, %v944, %v938
        %v948 = vld [vmem:[#allocation8] sm:$0xf]
        %v949 = vld [vmem:[#allocation8 + $0x4] sm:$0xf]
        %v950 = vld [vmem:[#allocation8 + $0x8] sm:$0xf]
        %v951 = vld [vmem:[#allocation8 + $0xc] sm:$0xf]
        %v952 = vld [vmem:[#allocation8 + $0x10] sm:$0xf]
        %v953 = vld [vmem:[#allocation8 + $0x14] sm:$0xf]
        %v954 = vld [vmem:[#allocation8 + $0x18] sm:$0xf]
        %v955 = vld [vmem:[#allocation8 + $0x1c] sm:$0xf]
        %v964 = vunpack.c.l.b16 %v948
        %v965 = vunpack.c.l.b16 %v949
        %v966 = vunpack.c.l.b16 %v950
        %v967 = vunpack.c.l.b16 %v951
        %v968 = vunpack.c.l.b16 %v952
        %v969 = vunpack.c.l.b16 %v953
        %v970 = vunpack.c.l.b16 %v954
        %v971 = vunpack.c.l.b16 %v955
        %v972 = vpack.c.b16 %v965, %v964
        %v973 = vpack.c.b16 %v967, %v966
        %v974 = vpack.c.b16 %v969, %v968
        %v975 = vpack.c.b16 %v971, %v970
        %v980 = vsel %vm400, %v947, 0
        %982 = vmatpush.bf16.msra.mxu0 0
        %983 = vmatpush.bf16.msra.mxu0 0
        %984 = vmatpush.bf16.msra.mxu0 0
        %985 = vmatpush.bf16.msra.mxu0 0
        %986 = vmatpush.bf16.msra.mxu0 %v975
        %987 = vmatpush.bf16.msra.mxu0 %v974
        %988 = vmatpush.bf16.msra.mxu0 %v973
        %989 = vmatpush.bf16.msra.mxu0 %v972
        %990 = vmatmul.bf16.gmra.mxu0 %v980
        %v991 = vpop.f32.mrf.mxu0
        %v992 = vadd.f32 0.0, %v991
        %v993 = vpop.f32.mrf.mxu0
        %994 = vdwg.mxu0
        %v995 = vadd.f32 %v397, %v992
        %v996 = vld [vmem:[%s8] sm:$0x1]
        %v997 = vmul.f32 %v995, %v995
        %v998 = vsel %vm400, %v997, 0.0
        %999 = vadd.xlane.f32.xlu0 %v998
        %v1000 = vpop.xlane.xlu0 %999
        %v1001 = vmul.f32 %v1000, %v410
        %v1002 = vadd.f32 %v1001, 1e-05
        %v1003 = vrsqrt.pop %v1002
        %v1004 = vmul.f32 %v1003, %v1002
        %v1005 = vmul.f32 %v1004, %v1003
        %v1006 = vmul.f32 0.5, %v1005
        %v1007 = vsub.f32 1.5, %v1006
        %v1008 = vmul.f32 %v1003, %v1007
        %vm1009 = vweird.f32 %v1002
        %vm1010 = vweird.f32 %v1003
        %vm1011 = vmor %vm1009, %vm1010
        %v1012 = vsel %vm1011, %v1003, %v1008
        %v1013 = vmul.f32 %v995, %v1012
        %v1015 = vperm.slane %v996, 0
        %v1017 = vmul.f32 %v1013, %v1015
        %v1018 = vpack.c.bf16 %v1017, %v1017
        %v1019 = vld [vmem:[%s5] sm:$0xff]
        %v1020 = vld [vmem:[%s5 + $0x8] sm:$0xf]
        %v1021 = vld [vmem:[%s5 + $0xc] sm:$0xff]
        %v1022 = vld [vmem:[%s5 + $0x14] sm:$0xf]
        %v1023 = vld [vmem:[%s5 + $0x18] sm:$0xff]
        %v1024 = vld [vmem:[%s5 + $0x20] sm:$0xf]
        %v1025 = vld [vmem:[%s5 + $0x24] sm:$0xff]
        %v1026 = vld [vmem:[%s5 + $0x2c] sm:$0xf]
        %v1027 = vld [vmem:[%s5 + $0x30] sm:$0xff]
        %v1028 = vld [vmem:[%s5 + $0x38] sm:$0xf]
        %v1029 = vld [vmem:[%s5 + $0x3c] sm:$0xff]
        %v1030 = vld [vmem:[%s5 + $0x44] sm:$0xf]
        %v1031 = vld [vmem:[%s5 + $0x48] sm:$0xff]
        %v1032 = vld [vmem:[%s5 + $0x50] sm:$0xf]
        %v1033 = vld [vmem:[%s5 + $0x54] sm:$0xff]
        %v1034 = vld [vmem:[%s5 + $0x5c] sm:$0xf]
        %v1051 = vunpack.c.l.b16 %v1019
        %v1052 = vunpack.c.h.b16 %v1019
        %v1053 = vunpack.c.l.b16 %v1020
        %v1054 = vunpack.c.l.b16 %v1021
        %v1055 = vunpack.c.h.b16 %v1021
        %v1056 = vunpack.c.l.b16 %v1022
        %v1057 = vunpack.c.l.b16 %v1023
        %v1058 = vunpack.c.h.b16 %v1023
        %v1059 = vunpack.c.l.b16 %v1024
        %v1060 = vunpack.c.l.b16 %v1025
        %v1061 = vunpack.c.h.b16 %v1025
        %v1062 = vunpack.c.l.b16 %v1026
        %v1063 = vunpack.c.l.b16 %v1027
        %v1064 = vunpack.c.h.b16 %v1027
        %v1065 = vunpack.c.l.b16 %v1028
        %v1066 = vunpack.c.l.b16 %v1029
        %v1067 = vunpack.c.h.b16 %v1029
        %v1068 = vunpack.c.l.b16 %v1030
        %v1069 = vunpack.c.l.b16 %v1031
        %v1070 = vunpack.c.h.b16 %v1031
        %v1071 = vunpack.c.l.b16 %v1032
        %v1072 = vunpack.c.l.b16 %v1033
        %v1073 = vunpack.c.h.b16 %v1033
        %v1074 = vunpack.c.l.b16 %v1034
        %v1075 = vpack.c.b16 %v1054, %v1051
        %v1076 = vpack.c.b16 %v1055, %v1052
        %v1077 = vpack.c.b16 %v1056, %v1053
        %v1078 = vpack.c.b16 %v1060, %v1057
        %v1079 = vpack.c.b16 %v1061, %v1058
        %v1080 = vpack.c.b16 %v1062, %v1059
        %v1081 = vpack.c.b16 %v1066, %v1063
        %v1082 = vpack.c.b16 %v1067, %v1064
        %v1083 = vpack.c.b16 %v1068, %v1065
        %v1084 = vpack.c.b16 %v1072, %v1069
        %v1085 = vpack.c.b16 %v1073, %v1070
        %v1086 = vpack.c.b16 %v1074, %v1071
        %v1100 = vsel %vm400, %v1018, 0
        %1102 = vmatpush.bf16.msra.mxu0 0
        %1103 = vmatpush.bf16.msra.mxu0 0
        %1104 = vmatpush.bf16.msra.mxu0 0
        %1105 = vmatpush.bf16.msra.mxu0 0
        %1106 = vmatpush.bf16.msra.mxu0 %v1084
        %1107 = vmatpush.bf16.msra.mxu0 %v1081
        %1108 = vmatpush.bf16.msra.mxu0 %v1078
        %1109 = vmatpush.bf16.msra.mxu0 %v1075
        %1110 = vmatmul.bf16.gmra.mxu0 %v1100
        %v1111 = vpop.f32.mrf.mxu0
        %v1112 = vadd.f32 0.0, %v1111
        %v1113 = vpop.f32.mrf.mxu0
        %1114 = vdwg.mxu0
        %1115 = vmatpush.bf16.msra.mxu0 0
        %1116 = vmatpush.bf16.msra.mxu0 0
        %1117 = vmatpush.bf16.msra.mxu0 0
        %1118 = vmatpush.bf16.msra.mxu0 0
        %1119 = vmatpush.bf16.msra.mxu0 %v1085
        %1120 = vmatpush.bf16.msra.mxu0 %v1082
        %1121 = vmatpush.bf16.msra.mxu0 %v1079
        %1122 = vmatpush.bf16.msra.mxu0 %v1076
        %1123 = vmatmul.bf16.gmra.mxu0 %v1100
        %v1124 = vpop.f32.mrf.mxu0
        %v1125 = vadd.f32 0.0, %v1124
        %v1126 = vpop.f32.mrf.mxu0
        %1127 = vdwg.mxu0
        %1128 = vmatpush.bf16.msra.mxu0 0
        %1129 = vmatpush.bf16.msra.mxu0 0
        %1130 = vmatpush.bf16.msra.mxu0 0
        %1131 = vmatpush.bf16.msra.mxu0 0
        %1132 = vmatpush.bf16.msra.mxu0 %v1086
        %1133 = vmatpush.bf16.msra.mxu0 %v1083
        %1134 = vmatpush.bf16.msra.mxu0 %v1080
        %1135 = vmatpush.bf16.msra.mxu0 %v1077
        %1136 = vmatmul.bf16.gmra.mxu0 %v1100
        %v1137 = vpop.f32.mrf.mxu0
        %v1138 = vadd.f32 0.0, %v1137
        %v1139 = vpop.f32.mrf.mxu0
        %1140 = vdwg.mxu0
        %v1141 = vsub.f32 0.0, %v1112
        %v1142 = vsub.f32 0.0, %v1125
        %v1143 = vmul.f32 %v1141, 1.442695
        %v1144 = vpow.pop %v1143
        %v1145 = vmul.f32 %v1142, 1.442695
        %v1146 = vpow.pop %v1145
        %v1147 = vadd.f32 %v1144, 1.0
        %v1148 = vadd.f32 %v1146, 1.0
        %v1149 = vrcp.pop %v1147
        %v1150 = vrcp.pop %v1148
        %v1151 = vmul.f32 %v1112, %v1149
        %v1152 = vmul.f32 %v1125, %v1150
        %1155 = vrot.lane.b32.xlu0 %v1125, 64
        %v1156 = vpop.permute.xlu0 %1155
        %1157 = vrot.lane.b32.xlu0 %v1138, 64
        %v1158 = vpop.permute.xlu0 %1157
        %v1159 = vsel %vm400, %v1156, %v1158
        %v1162 = vmul.f32 %v1151, %v1159
        %v1163 = vmul.f32 %v1152, %v1158
        %v1164 = vpack.c.bf16 %v1162, %v1162
        %v1165 = vpack.c.bf16 %v1163, %v1163
        %v1166 = vld [vmem:[%s6] sm:$0xf]
        %v1167 = vld [vmem:[%s6 + $0x4] sm:$0xf]
        %v1168 = vld [vmem:[%s6 + $0x8] sm:$0xf]
        %v1169 = vld [vmem:[%s6 + $0xc] sm:$0xf]
        %v1170 = vld [vmem:[%s6 + $0x10] sm:$0xf]
        %v1171 = vld [vmem:[%s6 + $0x14] sm:$0xf]
        %v1172 = vld [vmem:[%s6 + $0x18] sm:$0xf]
        %v1173 = vld [vmem:[%s6 + $0x1c] sm:$0xf]
        %v1174 = vld [vmem:[%s6 + $0x20] sm:$0xf]
        %v1175 = vld [vmem:[%s6 + $0x24] sm:$0xf]
        %v1176 = vld [vmem:[%s6 + $0x28] sm:$0xf]
        %v1177 = vld [vmem:[%s6 + $0x2c] sm:$0xf]
        %v1178 = vld [vmem:[%s6 + $0x30] sm:$0xf]
        %v1179 = vld [vmem:[%s6 + $0x34] sm:$0xf]
        %v1180 = vld [vmem:[%s6 + $0x38] sm:$0xf]
        %v1181 = vld [vmem:[%s6 + $0x3c] sm:$0xf]
        %v1182 = vld [vmem:[%s6 + $0x40] sm:$0xf]
        %v1183 = vld [vmem:[%s6 + $0x44] sm:$0xf]
        %v1184 = vld [vmem:[%s6 + $0x48] sm:$0xf]
        %v1185 = vld [vmem:[%s6 + $0x4c] sm:$0xf]
        %v1186 = vld [vmem:[%s6 + $0x50] sm:$0xf]
        %v1187 = vld [vmem:[%s6 + $0x54] sm:$0xf]
        %v1188 = vld [vmem:[%s6 + $0x58] sm:$0xf]
        %v1189 = vld [vmem:[%s6 + $0x5c] sm:$0xf]
        %v1214 = vunpack.c.l.b16 %v1166
        %v1215 = vunpack.c.l.b16 %v1167
        %v1216 = vunpack.c.l.b16 %v1168
        %v1217 = vunpack.c.l.b16 %v1169
        %v1218 = vunpack.c.l.b16 %v1170
        %v1219 = vunpack.c.l.b16 %v1171
        %v1220 = vunpack.c.l.b16 %v1172
        %v1221 = vunpack.c.l.b16 %v1173
        %v1222 = vunpack.c.l.b16 %v1174
        %v1223 = vunpack.c.l.b16 %v1175
        %v1224 = vunpack.c.l.b16 %v1176
        %v1225 = vunpack.c.l.b16 %v1177
        %v1226 = vunpack.c.l.b16 %v1178
        %v1227 = vunpack.c.l.b16 %v1179
        %v1228 = vunpack.c.l.b16 %v1180
        %v1229 = vunpack.c.l.b16 %v1181
        %v1230 = vunpack.c.l.b16 %v1182
        %v1231 = vunpack.c.l.b16 %v1183
        %v1232 = vunpack.c.l.b16 %v1184
        %v1233 = vunpack.c.l.b16 %v1185
        %v1234 = vunpack.c.l.b16 %v1186
        %v1235 = vunpack.c.l.b16 %v1187
        %v1236 = vunpack.c.l.b16 %v1188
        %v1237 = vunpack.c.l.b16 %v1189
        %v1238 = vpack.c.b16 %v1215, %v1214
        %v1239 = vpack.c.b16 %v1217, %v1216
        %v1240 = vpack.c.b16 %v1219, %v1218
        %v1241 = vpack.c.b16 %v1221, %v1220
        %v1242 = vpack.c.b16 %v1223, %v1222
        %v1243 = vpack.c.b16 %v1225, %v1224
        %v1244 = vpack.c.b16 %v1227, %v1226
        %v1245 = vpack.c.b16 %v1229, %v1228
        %v1246 = vpack.c.b16 %v1231, %v1230
        %v1247 = vpack.c.b16 %v1233, %v1232
        %v1248 = vpack.c.b16 %v1235, %v1234
        %v1249 = vpack.c.b16 %v1237, %v1236
        %v1263 = vsel %vm400, %v1165, 0
        %1265 = vmatpush.bf16.msra.mxu0 %v1245
        %1266 = vmatpush.bf16.msra.mxu0 %v1244
        %1267 = vmatpush.bf16.msra.mxu0 %v1243
        %1268 = vmatpush.bf16.msra.mxu0 %v1242
        %1269 = vmatpush.bf16.msra.mxu0 %v1241
        %1270 = vmatpush.bf16.msra.mxu0 %v1240
        %1271 = vmatpush.bf16.msra.mxu0 %v1239
        %1272 = vmatpush.bf16.msra.mxu0 %v1238
        %1273 = vmatmul.bf16.gmra.mxu0 %v1164
        %v1274 = vpop.f32.mrf.mxu0
        %v1275 = vadd.f32 0.0, %v1274
        %v1276 = vpop.f32.mrf.mxu0
        %1277 = vdwg.mxu0
        %1278 = vmatpush.bf16.msra.mxu0 0
        %1279 = vmatpush.bf16.msra.mxu0 0
        %1280 = vmatpush.bf16.msra.mxu0 0
        %1281 = vmatpush.bf16.msra.mxu0 0
        %1282 = vmatpush.bf16.msra.mxu0 %v1249
        %1283 = vmatpush.bf16.msra.mxu0 %v1248
        %1284 = vmatpush.bf16.msra.mxu0 %v1247
        %1285 = vmatpush.bf16.msra.mxu0 %v1246
        %1286 = vmatmul.bf16.gmra.mxu0 %v1263
        %v1287 = vpop.f32.mrf.mxu0
        %v1288 = vadd.f32 %v1275, %v1287
        %v1289 = vpop.f32.mrf.mxu0
        %1290 = vdwg.mxu0
        %v1291 = vadd.f32 %v995, %v1288
        %1292 = vst.msk [vmem:[%s395] sm:$0xff] %vm400, %v1291
        %s1293 = sand.u32 %s230, 1
        %s1294 = scalar_lea.sflag [#allocation4], %s1293
        %s1295 = sand.u32 %s230, 1
        %s1296 = smul.addr %s1295, 8
        %s1297 = scalar_lea.vmem [#allocation10], %s1296
        // Predicated region
        $region73: #{tpu_custom_call.1} parent=55 // pred_check
          %p1298 = pneg %p240
        $region74: #{tpu_custom_call.1} parent=55 // pred_check_branch
          %1300 = sbr.rel (%p1298) target = $region76
        $region75: #{tpu_custom_call.1} parent=55 // pred_region
          %1302 = vsyncadd %s1294, 0
          %s1303 = smul.addr %s28, 8
          %s1304 = scalar_lea.hbm %s9, %s1303
          %s1306 = sshll.u32 %s1297, 4
          %s1307 = int_to_ptr.vmem [resolvable:$true] %s1306
          %s1308 = sshll.u32 %s1304, 4
          %s1309 = int_to_ptr.hbm [resolvable:$true] %s1308
          %1311 = dma.vmem_to_hbm [thread:$0]  %s1307, 128, %s1309, %s1294
        $region76: #{tpu_custom_call.1} parent=55 // pred_fallthru
          _
      $region56: #{tpu_custom_call.1} parent=5 // pred_fallthru
        _
      %p1312 = scmp.le.s32.totalorder 2, %s23
      // Predicated region
      $region77: #{tpu_custom_call.1} parent=5 // pred_check
        %p1313 = pneg %p1312
      $region78: #{tpu_custom_call.1} parent=5 // pred_check_branch
        %1315 = sbr.rel (%p1313) target = $region80
      $region79: #{tpu_custom_call.1} parent=5 // pred_region
        %s1316 = ssub.s32 %s23, 2
        // Predicated region
        $region81: #{tpu_custom_call.1} parent=79 // pred_check
          %p1317 = pneg %p246
        $region82: #{tpu_custom_call.1} parent=79 // pred_check_branch
          %1319 = sbr.rel (%p1317) target = $region84
        $region83: #{tpu_custom_call.1} parent=79 // pred_region
          %s1320 = sand.u32 %s231, 1
          %s1321 = scalar_lea.sflag [#allocation4], %s1320
          %s1322 = sand.u32 %s231, 1
          %s1323 = smul.addr %s1322, 8
          %s1324 = scalar_lea.vmem [#allocation10], %s1323
          %1326 = dma.done %s1321, 128
        $region84: #{tpu_custom_call.1} parent=79 // pred_fallthru
          _
      $region80: #{tpu_custom_call.1} parent=5 // pred_fallthru
        _
    $region6: #{tpu_custom_call.1} parent=1 // loop_footer
      %s27 = sadd.s32 1, %s23
    $region7: #{tpu_custom_call.1} parent=1 // loop_footer_branch
      %22 = sbr.rel target = $region3
    $region8: #{tpu_custom_call.1} parent=1 // loop_exit
      _
    %1327 = vsyncpa [#allocation3], 1
    %s1328 = scalar_lea.sflag [#allocation3], 1
    %1329 = vsyncpa %s1328, 1
    %1330 = vsyncpa [#allocation6], 1
    %1331 = vsyncpa [#allocation9], 1
    %1332 = vsyncpa [#allocation4], 1
    %s1333 = scalar_lea.sflag [#allocation4], 1
    %1334 = vsyncpa %s1333, 1

</llo_original>
